<compile_context>
chip_gen: v5e
topology: v5e:2x2
jax: 0.10.0
libtpu: 0.0.40
codegen_flags: <defaults>
</compile_context>

<pallas_src>
import jax
import jax.numpy as jnp
from jax.experimental import pallas as pl
from jax.experimental.pallas import tpu as pltpu

IN_FEATURES = 3072
HIDDEN = 1024
LANE = 128


# ---------------------------------------------------------------------------
# Kernel: out = (x @ W1 + b1) @ W2 + b2, with K-tiled first GEMM
# ---------------------------------------------------------------------------
def _mlp_kernel(x_ref, w1_ref, b1_ref, w2_ref, b2_ref, out_ref, acc_ref):
    k = pl.program_id(0)

    @pl.when(k == 0)
    def _():
        acc_ref[...] = jnp.zeros_like(acc_ref)

    # Partial product of the first GEMM for this K-tile (MXU, f32 accumulate).
    acc_ref[...] += jnp.dot(x_ref[...], w1_ref[...],
                            preferred_element_type=jnp.float32)

    @pl.when(k == pl.num_programs(0) - 1)
    def _():
        hidden = acc_ref[...] + b1_ref[...]                    # linear1 bias
        out_ref[...] = (jnp.dot(hidden, w2_ref[...],
                                preferred_element_type=jnp.float32)
                        + b2_ref[...]).astype(out_ref.dtype)   # linear bias


# ---------------------------------------------------------------------------
# Wrapper
# ---------------------------------------------------------------------------
def mobilenet162_forward(x, w1_io, b1, w2_io, b2, *, tk=512):
    """Fused forward of customMobileNet162.

    x      : any shape whose elements reshape to (-1, 3072) (torch .view)
    w1_io  : (3072, 1024)        == linear1.weight.T
    b1     : (1024,)
    w2_io  : (1024, num_classes) == linear.weight.T
    b2     : (num_classes,)
    """
    x2 = x.reshape(-1, IN_FEATURES).astype(jnp.float32)
    batch = x2.shape[0]
    num_classes = w2_io.shape[1]

    # Pad the tiny class dim up to a full 128-lane slab -> unmasked stores.
    ncp = max(LANE, ((num_classes + LANE - 1) // LANE) * LANE)
    w2_p = jnp.zeros((HIDDEN, ncp), jnp.float32).at[:, :num_classes].set(
        w2_io.astype(jnp.float32))
    b2_p = jnp.zeros((1, ncp), jnp.float32).at[0, :num_classes].set(
        b2.astype(jnp.float32))
    b1_p = b1.reshape(1, HIDDEN).astype(jnp.float32)

    n_k = IN_FEATURES // tk
    out_p = pl.pallas_call(
        _mlp_kernel,
        out_shape=jax.ShapeDtypeStruct((batch, ncp), jnp.float32),
        grid_spec=pltpu.PrefetchScalarGridSpec(
            num_scalar_prefetch=0,
            grid=(n_k,),
            in_specs=[
                pl.BlockSpec((batch, tk), lambda k: (0, k)),     # x K-tile
                pl.BlockSpec((tk, HIDDEN), lambda k: (k, 0)),    # W1 K-tile
                pl.BlockSpec((1, HIDDEN), lambda k: (0, 0)),     # b1 (resident)
                pl.BlockSpec((HIDDEN, ncp), lambda k: (0, 0)),   # W2 (resident)
                pl.BlockSpec((1, ncp), lambda k: (0, 0)),        # b2 (resident)
            ],
            out_specs=pl.BlockSpec((batch, ncp), lambda k: (0, 0)),
            scratch_shapes=[pltpu.VMEM((batch, HIDDEN), jnp.float32)],
        ),
        compiler_params=pltpu.CompilerParams(
            dimension_semantics=("arbitrary",),   # K is a reduction axis
            vmem_limit_bytes=32 * 1024 * 1024,
        ),
    )(x2, w1_io.astype(jnp.float32), b1_p, w2_p, b2_p)

    return out_p[:, :num_classes]


# ---------------------------------------------------------------------------
# Pure-JAX reference (torch-layout weights), for the correctness check only
# ---------------------------------------------------------------------------
def reference_forward(x, w1, b1, w2, b2):
    x2 = x.reshape(-1, IN_FEATURES).astype(jnp.float32)
    h = jnp.dot(x2, w1.T, precision=jax.lax.Precision.HIGHEST) + b1
    return jnp.dot(h, w2.T, precision=jax.lax.Precision.HIGHEST) + b2


# ---------------------------------------------------------------------------
if __name__ == "__main__":
    BATCH = 2
    NUM_CLASSES = 10   # args.num_classes

    key = jax.random.PRNGKey(0)
    kx, kw1, kb1, kw2, kb2 = jax.random.split(key, 5)

    # Input views to (BATCH, 3072), matching x.view(-1, 3072).
    x = jax.random.normal(kx, (BATCH, 3, 32, 32), jnp.float32)

    # PyTorch nn.Linear stores weight as (out_features, in_features).
    w1 = 0.03 * (jax.random.uniform(kw1, (HIDDEN, IN_FEATURES), jnp.float32) - 0.5)
    b1 = 0.03 * (jax.random.uniform(kb1, (HIDDEN,), jnp.float32) - 0.5)
    w2 = 0.05 * (jax.random.uniform(kw2, (NUM_CLASSES, HIDDEN), jnp.float32) - 0.5)
    b2 = 0.05 * (jax.random.uniform(kb2, (NUM_CLASSES,), jnp.float32) - 0.5)

    # One-time parameter packing (not in the hot path): transpose to (in, out).
    w1_io, w2_io = w1.T, w2.T

    fwd = jax.jit(mobilenet162_forward)
    out = jax.block_until_ready(fwd(x, w1_io, b1, w2_io, b2))
    ref = jax.block_until_ready(reference_forward(x, w1, b1, w2, b2))

    assert out.shape == (BATCH, NUM_CLASSES), out.shape
    max_err = float(jnp.max(jnp.abs(out - ref)))
    assert jnp.allclose(out, ref, atol=1e-3, rtol=1e-3), max_err
    print("KERNEL_OK")
</pallas_src>

<mosaic_0001>
module attributes {stable_mosaic.version = 11 : i64} {
  func.func @_mlp_kernel(%arg0: i32, %arg1: memref<2x512xf32, #tpu.memory_space<vmem>>, %arg2: memref<512x1024xf32, #tpu.memory_space<vmem>>, %arg3: memref<1x1024xf32, #tpu.memory_space<vmem>>, %arg4: memref<1024x128xf32, #tpu.memory_space<vmem>>, %arg5: memref<1x128xf32, #tpu.memory_space<vmem>>, %arg6: memref<2x128xf32, #tpu.memory_space<vmem>>, %arg7: memref<2x1024xf32, #tpu.memory_space<vmem>>) attributes {dimension_semantics = [#tpu.dimension_semantics<arbitrary>], iteration_bounds = array<i64: 6>, scalar_prefetch = 0 : i64, scratch_operands = 1 : i64, tpu.core_type = #tpu.core_type<tc>, window_params = [{transform_indices = @transform_0, window_bounds = array<i64: 2, 512>}, {transform_indices = @transform_1, window_bounds = array<i64: 512, 1024>}, {pipeline_mode = #tpu.pipeline_mode<synchronous>, transform_indices = @transform_2, window_bounds = array<i64: 1, 1024>}, {pipeline_mode = #tpu.pipeline_mode<synchronous>, transform_indices = @transform_3, window_bounds = array<i64: 1024, 128>}, {pipeline_mode = #tpu.pipeline_mode<synchronous>, transform_indices = @transform_4, window_bounds = array<i64: 1, 128>}, {pipeline_mode = #tpu.pipeline_mode<synchronous>, transform_indices = @transform_5, window_bounds = array<i64: 2, 128>}]} {
    %c0_i32 = arith.constant 0 : i32
    %0 = arith.cmpi eq, %arg0, %c0_i32 : i32
    %1 = arith.extui %0 : i1 to i32
    %c0_i32_0 = arith.constant 0 : i32
    %2 = arith.cmpi ne, %1, %c0_i32_0 : i32
    scf.if %2 {
      %cst_9 = arith.constant 0.000000e+00 : f32
      %12 = vector.broadcast %cst_9 : f32 to vector<2x1024xf32>
      %c0_10 = arith.constant 0 : index
      %c0_11 = arith.constant 0 : index
      %13 = vector.load %arg7[%c0_10, %c0_11] : memref<2x1024xf32, #tpu.memory_space<vmem>>, vector<2x1024xf32>
      tpu.vector_store %arg7[%c0_10, %c0_11], %12 {strides = array<i32>} : memref<2x1024xf32, #tpu.memory_space<vmem>>, vector<2x1024xf32>,
    } else {
    }
    %c0 = arith.constant 0 : index
    %c0_1 = arith.constant 0 : index
    %3 = vector.load %arg7[%c0, %c0_1] : memref<2x1024xf32, #tpu.memory_space<vmem>>, vector<2x1024xf32>
    %c0_2 = arith.constant 0 : index
    %c0_3 = arith.constant 0 : index
    %4 = vector.load %arg1[%c0_2, %c0_3] : memref<2x512xf32, #tpu.memory_space<vmem>>, vector<2x512xf32>
    %c0_4 = arith.constant 0 : index
    %c0_5 = arith.constant 0 : index
    %5 = vector.load %arg2[%c0_4, %c0_5] : memref<512x1024xf32, #tpu.memory_space<vmem>>, vector<512x1024xf32>
    %cst = arith.constant dense<0.000000e+00> : vector<2x1024xf32>
    %6 = tpu.matmul %4, %5, %cst {dimension_numbers = #tpu.dot_dimension_numbers<[1], [0], [0], [1], [0, 0, 1, 1], [], []>} : vector<2x512xf32>, vector<512x1024xf32>, vector<2x1024xf32> -> vector<2x1024xf32>
    %7 = arith.addf %3, %6 : vector<2x1024xf32>
    %c0_6 = arith.constant 0 : index
    %c0_7 = arith.constant 0 : index
    %8 = vector.load %arg7[%c0_6, %c0_7] : memref<2x1024xf32, #tpu.memory_space<vmem>>, vector<2x1024xf32>
    tpu.vector_store %arg7[%c0_6, %c0_7], %7 {strides = array<i32>} : memref<2x1024xf32, #tpu.memory_space<vmem>>, vector<2x1024xf32>,
    %c5_i32 = arith.constant 5 : i32
    %9 = arith.cmpi eq, %arg0, %c5_i32 : i32
    %10 = arith.extui %9 : i1 to i32
    %c0_i32_8 = arith.constant 0 : i32
    %11 = arith.cmpi ne, %10, %c0_i32_8 : i32
    scf.if %11 {
      %c0_9 = arith.constant 0 : index
      %c0_10 = arith.constant 0 : index
      %12 = vector.load %arg7[%c0_9, %c0_10] : memref<2x1024xf32, #tpu.memory_space<vmem>>, vector<2x1024xf32>
      %c0_11 = arith.constant 0 : index
      %c0_12 = arith.constant 0 : index
      %13 = vector.load %arg3[%c0_11, %c0_12] : memref<1x1024xf32, #tpu.memory_space<vmem>>, vector<1x1024xf32>
      %14 = vector.broadcast %13 : vector<1x1024xf32> to vector<2x1024xf32>
      %15 = arith.addf %12, %14 : vector<2x1024xf32>
      %c0_13 = arith.constant 0 : index
      %c0_14 = arith.constant 0 : index
      %16 = vector.load %arg4[%c0_13, %c0_14] : memref<1024x128xf32, #tpu.memory_space<vmem>>, vector<1024x128xf32>
      %cst_15 = arith.constant dense<0.000000e+00> : vector<2x128xf32>
      %17 = tpu.matmul %15, %16, %cst_15 {dimension_numbers = #tpu.dot_dimension_numbers<[1], [0], [0], [1], [0, 0, 1, 1], [], []>} : vector<2x1024xf32>, vector<1024x128xf32>, vector<2x128xf32> -> vector<2x128xf32>
      %c0_16 = arith.constant 0 : index
      %c0_17 = arith.constant 0 : index
      %18 = vector.load %arg5[%c0_16, %c0_17] : memref<1x128xf32, #tpu.memory_space<vmem>>, vector<1x128xf32>
      %19 = vector.broadcast %18 : vector<1x128xf32> to vector<2x128xf32>
      %20 = arith.addf %17, %19 : vector<2x128xf32>
      %c0_18 = arith.constant 0 : index
      %c0_19 = arith.constant 0 : index
      %21 = vector.load %arg6[%c0_18, %c0_19] : memref<2x128xf32, #tpu.memory_space<vmem>>, vector<2x128xf32>
      tpu.vector_store %arg6[%c0_18, %c0_19], %20 {strides = array<i32>} : memref<2x128xf32, #tpu.memory_space<vmem>>, vector<2x128xf32>,
    } else {
    }
    return
  }
  func.func @transform_0(%arg0: i32) -> (i32, i32) {
    %c0_i32 = arith.constant 0 : i32
    %c0_i32_0 = arith.constant 0 : i32
    return %c0_i32, %arg0 : i32, i32
  }
  func.func @transform_1(%arg0: i32) -> (i32, i32) {
    %c0_i32 = arith.constant 0 : i32
    %c0_i32_0 = arith.constant 0 : i32
    return %arg0, %c0_i32 : i32, i32
  }
  func.func @transform_2(%arg0: i32) -> (i32, i32) {
    %c0_i32 = arith.constant 0 : i32
    %c0_i32_0 = arith.constant 0 : i32
    %c0_i32_1 = arith.constant 0 : i32
    return %c0_i32, %c0_i32_0 : i32, i32
  }
  func.func @transform_3(%arg0: i32) -> (i32, i32) {
    %c0_i32 = arith.constant 0 : i32
    %c0_i32_0 = arith.constant 0 : i32
    %c0_i32_1 = arith.constant 0 : i32
    return %c0_i32, %c0_i32_0 : i32, i32
  }
  func.func @transform_4(%arg0: i32) -> (i32, i32) {
    %c0_i32 = arith.constant 0 : i32
    %c0_i32_0 = arith.constant 0 : i32
    %c0_i32_1 = arith.constant 0 : i32
    return %c0_i32, %c0_i32_0 : i32, i32
  }
  func.func @transform_5(%arg0: i32) -> (i32, i32) {
    %c0_i32 = arith.constant 0 : i32
    %c0_i32_0 = arith.constant 0 : i32
    %c0_i32_1 = arith.constant 0 : i32
    return %c0_i32, %c0_i32_0 : i32, i32
  }
}

</mosaic_0001>

<llo_original>
// kernel: mobilenet162_forward.1
$region0: #{mobilenet162_forward.1}
  #allocation0 [shape = 'u32[]', space=smem, size = 0x4, offset = 0x4, fixed_abs, tag = 'smem constant byte address 0x4 - core index']
  #allocation1 [shape = 'u32[72,128]{1,0:T(1,128)}', space=vmem, size = 0x9000, scoped, tag = 'internal scratch']
  #allocation2 [shape = 'f32[2,1024]{1,0:T(2,128)}', space=vmem, size = 0x2000, scoped, tag = 'scratch operand']
  %s0 = inlined_call_operand.vmem [shape: f32[2,3072], index: 0, kind: input, shape index: {}]
  %s1 = inlined_call_operand.hbm [shape: f32[3072,1024], index: 1, kind: input, shape index: {}]
  %s2 = inlined_call_operand.hbm [shape: f32[1,1024], index: 2, kind: input, shape index: {}]
  %s3 = inlined_call_operand.vmem [shape: f32[1024,128], index: 3, kind: input, shape index: {}]
  %s4 = inlined_call_operand.vmem [shape: f32[1,128], index: 4, kind: input, shape index: {}]
  %s5 = inlined_call_operand.hbm [shape: f32[2,128], index: 5, kind: output, shape index: {}]
  %s6 = sld [smem:[#allocation0]]
  $region69: #{mobilenet162_forward.1} parent=0
    _
  %s8 = ssub.s32 1, %s6
  %s9 = scalar_select 0, %s8, %s6
  $region1: #{mobilenet162_forward.1} parent=0
    #allocation3 [shape = 'u8[4194304]{0}', space=vmem, size = 0x400000, scoped, tag = 'input window, operand 1']
    #allocation4 [shape = 's32[2]{0}', space=sflag, size = 0x8, scoped, tag = 'scoped memory for mobilenet162_forward.1']
    #allocation5 [shape = 's32[2]{0}', space=sflag, size = 0x8, scoped, tag = 'scoped memory for mobilenet162_forward.1']
    #allocation6 [shape = 'u8[4096]{0}', space=vmem, size = 0x1000, scoped, tag = 'input window, operand 2, single buffered']
    #allocation7 [shape = 's32[1]{0}', space=sflag, size = 0x4, scoped, tag = 'scoped memory for mobilenet162_forward.1']
    #allocation8 [shape = 'u8[1024]{0}', space=vmem, size = 0x400, scoped, tag = 'output window, operand 0, single buffered']
    %10 = vsyncpa [#allocation4], 0
    %s11 = scalar_lea.sflag [#allocation4], 1
    %12 = vsyncpa %s11, 0
    %13 = vsyncpa [#allocation7], 0
    %14 = vsyncpa [#allocation5], 0
    loop: start=0, step=1, limit=8
    $region2: #{mobilenet162_forward.1} parent=1 // loop_pre_header
      _
    $region3: #{mobilenet162_forward.1} parent=1 // loop_header
      %s16 = sphi 0, %s20
      %p17 = scmp.ge.s32.totalorder %s16, 8
      %s26 = sphi 0, %s28
      %s29 = sphi 0, %s26
      %s30 = sphi 0, %s29
      %s46 = sphi 0, %s30
      %s52 = sphi 0, %s54
      %s55 = sphi 0, %s52
      %s56 = sphi 0, %s55
      %s72 = sphi 0, %s56
      %s76 = sphi 0, %s76
      %s78 = sphi 0, %s76
      %s79 = sphi 0, %s78
      %s93 = sphi 0, %s79
      %s97 = sphi 0, %s97
      %s99 = sphi 0, %s97
      %s100 = sphi 0, %s99
      %s114 = sphi 0, %s100
      %s118 = sphi 0, %s118
      %s120 = sphi 0, %s118
      %s121 = sphi 0, %s120
      %s135 = sphi 0, %s121
      %s139 = sphi 0, %s139
      %s141 = sphi 0, %s139
      %s142 = sphi 0, %s141
      %s156 = sphi 0, %s142
    $region4: #{mobilenet162_forward.1} parent=1 // loop_header_branch
      %19 = sbr.rel (%p17) target = $region8
    $region5: #{mobilenet162_forward.1} parent=1 // loop_body
      %s21 = ssub.s32 %s16, 1
      %s22 = ssub.s32 %s16, 2
      %s23 = sadd.s32 %s16, 1
      %s24 = ssub.s32 %s16, %s23
      %p25 = scmp.eq.s32.totalorder %s24, 0
      %s27 = sadd.s32 %s26, 1
      %s28 = scalar_select %p25, %s26, %s27
      %p31 = pneg %p25
      %p32 = scmp.eq.s32.totalorder %s16, 5
      %p33 = por %p31, %p32
      %p34 = scmp.ne.s32.totalorder %s26, %s29
      %p35 = scmp.eq.s32.totalorder %s16, 0
      %p36 = por %p34, %p35
      %p37 = scmp.ne.s32.totalorder %s26, %s29
      %p38 = scmp.eq.s32.totalorder %s21, 5
      %p39 = por %p37, %p38
      %p40 = scmp.ne.s32.totalorder %s29, %s30
      %p41 = scmp.eq.s32.totalorder %s21, 0
      %p42 = por %p40, %p41
      %p43 = scmp.ne.s32.totalorder %s29, %s30
      %p44 = scmp.eq.s32.totalorder %s22, 5
      %p45 = por %p43, %p44
      %p47 = scmp.ne.s32.totalorder %s30, %s46
      %p48 = scmp.eq.s32.totalorder %s22, 0
      %p49 = por %p47, %p48
      %s50 = ssub.s32 %s16, %s23
      %p51 = scmp.eq.s32.totalorder %s50, 0
      %s53 = sadd.s32 %s52, 1
      %s54 = scalar_select %p51, %s52, %s53
      %p57 = pneg %p51
      %p58 = scmp.eq.s32.totalorder %s16, 5
      %p59 = por %p57, %p58
      %p60 = scmp.ne.s32.totalorder %s52, %s55
      %p61 = scmp.eq.s32.totalorder %s16, 0
      %p62 = por %p60, %p61
      %p63 = scmp.ne.s32.totalorder %s52, %s55
      %p64 = scmp.eq.s32.totalorder %s21, 5
      %p65 = por %p63, %p64
      %p66 = scmp.ne.s32.totalorder %s55, %s56
      %p67 = scmp.eq.s32.totalorder %s21, 0
      %p68 = por %p66, %p67
      %p69 = scmp.ne.s32.totalorder %s55, %s56
      %p70 = scmp.eq.s32.totalorder %s22, 5
      %p71 = por %p69, %p70
      %p73 = scmp.ne.s32.totalorder %s56, %s72
      %p74 = scmp.eq.s32.totalorder %s22, 0
      %p75 = por %p73, %p74
      %s77 = sadd.s32 %s76, 1
      %p80 = scmp.eq.s32.totalorder %s16, 5
      %p81 = scmp.ne.s32.totalorder %s76, %s78
      %p82 = scmp.eq.s32.totalorder %s16, 0
      %p83 = por %p81, %p82
      %p84 = scmp.ne.s32.totalorder %s76, %s78
      %p85 = scmp.eq.s32.totalorder %s21, 5
      %p86 = por %p84, %p85
      %p87 = scmp.ne.s32.totalorder %s78, %s79
      %p88 = scmp.eq.s32.totalorder %s21, 0
      %p89 = por %p87, %p88
      %p90 = scmp.ne.s32.totalorder %s78, %s79
      %p91 = scmp.eq.s32.totalorder %s22, 5
      %p92 = por %p90, %p91
      %p94 = scmp.ne.s32.totalorder %s79, %s93
      %p95 = scmp.eq.s32.totalorder %s22, 0
      %p96 = por %p94, %p95
      %s98 = sadd.s32 %s97, 1
      %p101 = scmp.eq.s32.totalorder %s16, 5
      %p102 = scmp.ne.s32.totalorder %s97, %s99
      %p103 = scmp.eq.s32.totalorder %s16, 0
      %p104 = por %p102, %p103
      %p105 = scmp.ne.s32.totalorder %s97, %s99
      %p106 = scmp.eq.s32.totalorder %s21, 5
      %p107 = por %p105, %p106
      %p108 = scmp.ne.s32.totalorder %s99, %s100
      %p109 = scmp.eq.s32.totalorder %s21, 0
      %p110 = por %p108, %p109
      %p111 = scmp.ne.s32.totalorder %s99, %s100
      %p112 = scmp.eq.s32.totalorder %s22, 5
      %p113 = por %p111, %p112
      %p115 = scmp.ne.s32.totalorder %s100, %s114
      %p116 = scmp.eq.s32.totalorder %s22, 0
      %p117 = por %p115, %p116
      %s119 = sadd.s32 %s118, 1
      %p122 = scmp.eq.s32.totalorder %s16, 5
      %p123 = scmp.ne.s32.totalorder %s118, %s120
      %p124 = scmp.eq.s32.totalorder %s16, 0
      %p125 = por %p123, %p124
      %p126 = scmp.ne.s32.totalorder %s118, %s120
      %p127 = scmp.eq.s32.totalorder %s21, 5
      %p128 = por %p126, %p127
      %p129 = scmp.ne.s32.totalorder %s120, %s121
      %p130 = scmp.eq.s32.totalorder %s21, 0
      %p131 = por %p129, %p130
      %p132 = scmp.ne.s32.totalorder %s120, %s121
      %p133 = scmp.eq.s32.totalorder %s22, 5
      %p134 = por %p132, %p133
      %p136 = scmp.ne.s32.totalorder %s121, %s135
      %p137 = scmp.eq.s32.totalorder %s22, 0
      %p138 = por %p136, %p137
      %s140 = sadd.s32 %s139, 1
      %p143 = scmp.eq.s32.totalorder %s16, 5
      %p144 = scmp.ne.s32.totalorder %s139, %s141
      %p145 = scmp.eq.s32.totalorder %s16, 0
      %p146 = por %p144, %p145
      %p147 = scmp.ne.s32.totalorder %s139, %s141
      %p148 = scmp.eq.s32.totalorder %s21, 5
      %p149 = por %p147, %p148
      %p150 = scmp.ne.s32.totalorder %s141, %s142
      %p151 = scmp.eq.s32.totalorder %s21, 0
      %p152 = por %p150, %p151
      %p153 = scmp.ne.s32.totalorder %s141, %s142
      %p154 = scmp.eq.s32.totalorder %s22, 5
      %p155 = por %p153, %p154
      %p157 = scmp.ne.s32.totalorder %s142, %s156
      %p158 = scmp.eq.s32.totalorder %s22, 0
      %p159 = por %p157, %p158
      %p160 = scmp.le.s32.totalorder 1, %s16
      %p161 = scmp.lt.s32.totalorder %s16, 7
      %p162 = pnand %p160, %p161
      %p163 = pneg %p162
      // Predicated region
      $region9: #{mobilenet162_forward.1} parent=5 // pred_check
        _
      $region10: #{mobilenet162_forward.1} parent=5 // pred_check_branch
        %165 = sbr.rel (%p162) target = $region12
      $region11: #{mobilenet162_forward.1} parent=5 // pred_region
        %s166 = ssub.s32 %s16, 1
        // Predicated region
        $region13: #{mobilenet162_forward.1} parent=11 // pred_check
          %p167 = pneg %p89
        $region14: #{mobilenet162_forward.1} parent=11 // pred_check_branch
          %169 = sbr.rel (%p167) target = $region16
        $region15: #{mobilenet162_forward.1} parent=11 // pred_region
          %171 = vsyncadd [#allocation7], 0
          %s173 = sshll.u32 %s2, 4
          %s174 = int_to_ptr.hbm [resolvable:$true] %s173
          %s175 = sshll.u32 [#allocation6], 4
          %s176 = int_to_ptr.vmem [resolvable:$true] %s175
          %178 = dma.hbm_to_vmem [thread:$0]  %s174, 128, %s176, [#allocation7]
        $region16: #{mobilenet162_forward.1} parent=11 // pred_fallthru
          _
        // Predicated region
        $region17: #{mobilenet162_forward.1} parent=11 // pred_check
          %p179 = pneg %p110
        $region18: #{mobilenet162_forward.1} parent=11 // pred_check_branch
          %181 = sbr.rel (%p179) target = $region20
        $region19: #{mobilenet162_forward.1} parent=11 // pred_region
          _
        $region20: #{mobilenet162_forward.1} parent=11 // pred_fallthru
          _
        // Predicated region
        $region21: #{mobilenet162_forward.1} parent=11 // pred_check
          %p182 = pneg %p131
        $region22: #{mobilenet162_forward.1} parent=11 // pred_check_branch
          %184 = sbr.rel (%p182) target = $region24
        $region23: #{mobilenet162_forward.1} parent=11 // pred_region
          _
        $region24: #{mobilenet162_forward.1} parent=11 // pred_fallthru
          _
      $region12: #{mobilenet162_forward.1} parent=5 // pred_fallthru
        _
      %p185 = scmp.lt.s32.totalorder %s16, 6
      // Predicated region
      $region25: #{mobilenet162_forward.1} parent=5 // pred_check
        %p186 = pneg %p185
      $region26: #{mobilenet162_forward.1} parent=5 // pred_check_branch
        %188 = sbr.rel (%p186) target = $region28
      $region27: #{mobilenet162_forward.1} parent=5 // pred_region
        // Predicated region
        $region29: #{mobilenet162_forward.1} parent=27 // pred_check
          %p189 = pneg %p36
        $region30: #{mobilenet162_forward.1} parent=27 // pred_check_branch
          %191 = sbr.rel (%p189) target = $region32
        $region31: #{mobilenet162_forward.1} parent=27 // pred_region
          %s192 = smul.u32 4, %s16
          %p193 = scmp.lt.s32.totalorder %s192, 23
          %s194 = scalar_select %p193, %s192, 23
          %s195 = smul.addr %s194, 2
          %s196 = scalar_lea.vmem %s0, %s195
          %s197 = smul.u32 4, %s16
        $region32: #{mobilenet162_forward.1} parent=27 // pred_fallthru
          _
        // Predicated region
        $region33: #{mobilenet162_forward.1} parent=27 // pred_check
          %p198 = pneg %p62
        $region34: #{mobilenet162_forward.1} parent=27 // pred_check_branch
          %200 = sbr.rel (%p198) target = $region36
        $region35: #{mobilenet162_forward.1} parent=27 // pred_region
          %s201 = sand.u32 %s52, 1
          %s202 = scalar_lea.sflag [#allocation4], %s201
          %s203 = sand.u32 %s52, 1
          %s204 = smul.addr %s203, 4096
          %s205 = scalar_lea.vmem [#allocation3], %s204
          %s206 = smul.u32 64, %s16
          %208 = vsyncadd %s202, 0
          %s209 = smul.addr %s206, 8
          %s210 = smul.addr %s209, 8
          %s211 = scalar_lea.hbm %s1, %s210
          %s212 = sshll.u32 %s211, 4
          %s213 = int_to_ptr.hbm [resolvable:$true] %s212
          %s214 = sshll.u32 %s205, 4
          %s215 = int_to_ptr.vmem [resolvable:$true] %s214
          %220 = dma.hbm_to_vmem [thread:$0]  %s213, 65536, %s215, %s202, 1024, 1024, 64
        $region36: #{mobilenet162_forward.1} parent=27 // pred_fallthru
          _
      $region28: #{mobilenet162_forward.1} parent=5 // pred_fallthru
        _
      %p221 = scmp.le.s32.totalorder 1, %s16
      %p222 = scmp.lt.s32.totalorder %s16, 7
      %p223 = pnand %p221, %p222
      %p224 = pneg %p223
      // Predicated region
      $region37: #{mobilenet162_forward.1} parent=5 // pred_check
        _
      $region38: #{mobilenet162_forward.1} parent=5 // pred_check_branch
        %226 = sbr.rel (%p223) target = $region40
      $region39: #{mobilenet162_forward.1} parent=5 // pred_region
        %s227 = ssub.s32 %s16, 1
        %s228 = sand.u32 %s55, 1
        %s229 = scalar_lea.sflag [#allocation4], %s228
        %s230 = sand.u32 %s55, 1
        %s231 = smul.addr %s230, 4096
        %s232 = scalar_lea.vmem [#allocation3], %s231
        // Predicated region
        $region41: #{mobilenet162_forward.1} parent=39 // pred_check
          %p233 = pneg %p68
        $region42: #{mobilenet162_forward.1} parent=39 // pred_check_branch
          %235 = sbr.rel (%p233) target = $region44
        $region43: #{mobilenet162_forward.1} parent=39 // pred_region
          %237 = dma.done %s229, 65536
        $region44: #{mobilenet162_forward.1} parent=39 // pred_fallthru
          _
        // Predicated region
        $region45: #{mobilenet162_forward.1} parent=39 // pred_check
          %p238 = pneg %p89
        $region46: #{mobilenet162_forward.1} parent=39 // pred_check_branch
          %240 = sbr.rel (%p238) target = $region48
        $region47: #{mobilenet162_forward.1} parent=39 // pred_region
          %242 = dma.done [#allocation7], 128
        $region48: #{mobilenet162_forward.1} parent=39 // pred_fallthru
          _
        %s243 = smul.u32 4, %s21
        %p244 = scmp.lt.s32.totalorder %s243, 23
        %s245 = scalar_select %p244, %s243, 23
        %s246 = smul.addr %s245, 2
        %s247 = scalar_lea.vmem %s0, %s246
        %p248 = pneg %p42
        %p249 = pneg %p39
        %s250 = sand.u32 %s55, 1
        %s251 = scalar_lea.sflag [#allocation4], %s250
        %s252 = sand.u32 %s55, 1
        %s253 = smul.addr %s252, 4096
        %s254 = scalar_lea.vmem [#allocation3], %s253
        %p255 = pneg %p68
        %p256 = pneg %p65
        %p257 = pneg %p89
        %p258 = pneg %p86
        %p259 = pneg %p110
        %p260 = pneg %p107
        %p261 = pneg %p131
        %p262 = pneg %p128
        %p263 = pneg %p152
        %p264 = pneg %p149
        %s265 = smul.u32 4, %s21
        %p266 = scmp.lt.s32.totalorder %s265, 23
        %s267 = scalar_select %p266, %s265, 23
        %s268 = smul.addr %s267, 2
        %s269 = scalar_lea.vmem %s0, %s268
        %s270 = smul.u32 4, %s21
        %s271 = smul.u32 64, %s21
        %p272 = scmp.eq.s32.totalorder %s21, 0
        // Predicated region
        $region49: #{mobilenet162_forward.1} parent=39 // pred_check
          %p273 = pneg %p272
        $region50: #{mobilenet162_forward.1} parent=39 // pred_check_branch
          %275 = sbr.rel (%p273) target = $region52
        $region51: #{mobilenet162_forward.1} parent=39 // pred_region
          %276 = vst [vmem:[#allocation2] sm:$0xff] 0.0
          %277 = vst [vmem:[#allocation2 + $0x8] sm:$0xff] 0.0
        $region52: #{mobilenet162_forward.1} parent=39 // pred_fallthru
          _
        %v278 = vld [vmem:[#allocation2] sm:$0xff]
        %v279 = vld [vmem:[#allocation2 + $0x8] sm:$0xff]
        %v280 = vld [vmem:[%s269] sm:$0xff]
        %v281 = vld [vmem:[%s232] sm:$0xff]
        %v282 = vld [vmem:[%s232 + $0x8] sm:$0xff]
        %v283 = vld [vmem:[%s232 + $0x10] sm:$0xff]
        %v284 = vld [vmem:[%s232 + $0x18] sm:$0xff]
        %v285 = vld [vmem:[%s232 + $0x20] sm:$0xff]
        %v286 = vld [vmem:[%s232 + $0x28] sm:$0xff]
        %v287 = vld [vmem:[%s232 + $0x30] sm:$0xff]
        %v288 = vld [vmem:[%s232 + $0x38] sm:$0xff]
        %v289 = vld [vmem:[%s232 + $0x40] sm:$0xff]
        %v290 = vld [vmem:[%s232 + $0x48] sm:$0xff]
        %v291 = vld [vmem:[%s232 + $0x50] sm:$0xff]
        %v292 = vld [vmem:[%s232 + $0x58] sm:$0xff]
        %v293 = vld [vmem:[%s232 + $0x60] sm:$0xff]
        %v294 = vld [vmem:[%s232 + $0x68] sm:$0xff]
        %v295 = vld [vmem:[%s232 + $0x70] sm:$0xff]
        %v296 = vld [vmem:[%s232 + $0x78] sm:$0xff]
        %v297 = vld [vmem:[%s232 + $0x80] sm:$0xff]
        %v298 = vld [vmem:[%s232 + $0x88] sm:$0xff]
        %v299 = vld [vmem:[%s232 + $0x90] sm:$0xff]
        %v300 = vld [vmem:[%s232 + $0x98] sm:$0xff]
        %v301 = vld [vmem:[%s232 + $0xa0] sm:$0xff]
        %v302 = vld [vmem:[%s232 + $0xa8] sm:$0xff]
        %v303 = vld [vmem:[%s232 + $0xb0] sm:$0xff]
        %v304 = vld [vmem:[%s232 + $0xb8] sm:$0xff]
        %v305 = vld [vmem:[%s232 + $0xc0] sm:$0xff]
        %v306 = vld [vmem:[%s232 + $0xc8] sm:$0xff]
        %v307 = vld [vmem:[%s232 + $0xd0] sm:$0xff]
        %v308 = vld [vmem:[%s232 + $0xd8] sm:$0xff]
        %v309 = vld [vmem:[%s232 + $0xe0] sm:$0xff]
        %v310 = vld [vmem:[%s232 + $0xe8] sm:$0xff]
        %v311 = vld [vmem:[%s232 + $0xf0] sm:$0xff]
        %v312 = vld [vmem:[%s232 + $0xf8] sm:$0xff]
        %v313 = vld [vmem:[%s232 + $0x100] sm:$0xff]
        %v314 = vld [vmem:[%s232 + $0x108] sm:$0xff]
        %v315 = vld [vmem:[%s232 + $0x110] sm:$0xff]
        %v316 = vld [vmem:[%s232 + $0x118] sm:$0xff]
        %v317 = vld [vmem:[%s232 + $0x120] sm:$0xff]
        %v318 = vld [vmem:[%s232 + $0x128] sm:$0xff]
        %v319 = vld [vmem:[%s232 + $0x130] sm:$0xff]
        %v320 = vld [vmem:[%s232 + $0x138] sm:$0xff]
        %v321 = vld [vmem:[%s232 + $0x140] sm:$0xff]
        %v322 = vld [vmem:[%s232 + $0x148] sm:$0xff]
        %v323 = vld [vmem:[%s232 + $0x150] sm:$0xff]
        %v324 = vld [vmem:[%s232 + $0x158] sm:$0xff]
        %v325 = vld [vmem:[%s232 + $0x160] sm:$0xff]
        %v326 = vld [vmem:[%s232 + $0x168] sm:$0xff]
        %v327 = vld [vmem:[%s232 + $0x170] sm:$0xff]
        %v328 = vld [vmem:[%s232 + $0x178] sm:$0xff]
        %v329 = vld [vmem:[%s232 + $0x180] sm:$0xff]
        %v330 = vld [vmem:[%s232 + $0x188] sm:$0xff]
        %v331 = vld [vmem:[%s232 + $0x190] sm:$0xff]
        %v332 = vld [vmem:[%s232 + $0x198] sm:$0xff]
        %v333 = vld [vmem:[%s232 + $0x1a0] sm:$0xff]
        %v334 = vld [vmem:[%s232 + $0x1a8] sm:$0xff]
        %v335 = vld [vmem:[%s232 + $0x1b0] sm:$0xff]
        %v336 = vld [vmem:[%s232 + $0x1b8] sm:$0xff]
        %v337 = vld [vmem:[%s232 + $0x1c0] sm:$0xff]
        %v338 = vld [vmem:[%s232 + $0x1c8] sm:$0xff]
        %v339 = vld [vmem:[%s232 + $0x1d0] sm:$0xff]
        %v340 = vld [vmem:[%s232 + $0x1d8] sm:$0xff]
        %v341 = vld [vmem:[%s232 + $0x1e0] sm:$0xff]
        %v342 = vld [vmem:[%s232 + $0x1e8] sm:$0xff]
        %v343 = vld [vmem:[%s232 + $0x1f0] sm:$0xff]
        %v344 = vld [vmem:[%s232 + $0x1f8] sm:$0xff]
        %v345 = vld [vmem:[%s232 + $0x200] sm:$0xff]
        %v346 = vld [vmem:[%s232 + $0x208] sm:$0xff]
        %v347 = vld [vmem:[%s232 + $0x210] sm:$0xff]
        %v348 = vld [vmem:[%s232 + $0x218] sm:$0xff]
        %v349 = vld [vmem:[%s232 + $0x220] sm:$0xff]
        %v350 = vld [vmem:[%s232 + $0x228] sm:$0xff]
        %v351 = vld [vmem:[%s232 + $0x230] sm:$0xff]
        %v352 = vld [vmem:[%s232 + $0x238] sm:$0xff]
        %v353 = vld [vmem:[%s232 + $0x240] sm:$0xff]
        %v354 = vld [vmem:[%s232 + $0x248] sm:$0xff]
        %v355 = vld [vmem:[%s232 + $0x250] sm:$0xff]
        %v356 = vld [vmem:[%s232 + $0x258] sm:$0xff]
        %v357 = vld [vmem:[%s232 + $0x260] sm:$0xff]
        %v358 = vld [vmem:[%s232 + $0x268] sm:$0xff]
        %v359 = vld [vmem:[%s232 + $0x270] sm:$0xff]
        %v360 = vld [vmem:[%s232 + $0x278] sm:$0xff]
        %v361 = vld [vmem:[%s232 + $0x280] sm:$0xff]
        %v362 = vld [vmem:[%s232 + $0x288] sm:$0xff]
        %v363 = vld [vmem:[%s232 + $0x290] sm:$0xff]
        %v364 = vld [vmem:[%s232 + $0x298] sm:$0xff]
        %v365 = vld [vmem:[%s232 + $0x2a0] sm:$0xff]
        %v366 = vld [vmem:[%s232 + $0x2a8] sm:$0xff]
        %v367 = vld [vmem:[%s232 + $0x2b0] sm:$0xff]
        %v368 = vld [vmem:[%s232 + $0x2b8] sm:$0xff]
        %v369 = vld [vmem:[%s232 + $0x2c0] sm:$0xff]
        %v370 = vld [vmem:[%s232 + $0x2c8] sm:$0xff]
        %v371 = vld [vmem:[%s232 + $0x2d0] sm:$0xff]
        %v372 = vld [vmem:[%s232 + $0x2d8] sm:$0xff]
        %v373 = vld [vmem:[%s232 + $0x2e0] sm:$0xff]
        %v374 = vld [vmem:[%s232 + $0x2e8] sm:$0xff]
        %v375 = vld [vmem:[%s232 + $0x2f0] sm:$0xff]
        %v376 = vld [vmem:[%s232 + $0x2f8] sm:$0xff]
        %v377 = vld [vmem:[%s232 + $0x300] sm:$0xff]
        %v378 = vld [vmem:[%s232 + $0x308] sm:$0xff]
        %v379 = vld [vmem:[%s232 + $0x310] sm:$0xff]
        %v380 = vld [vmem:[%s232 + $0x318] sm:$0xff]
        %v381 = vld [vmem:[%s232 + $0x320] sm:$0xff]
        %v382 = vld [vmem:[%s232 + $0x328] sm:$0xff]
        %v383 = vld [vmem:[%s232 + $0x330] sm:$0xff]
        %v384 = vld [vmem:[%s232 + $0x338] sm:$0xff]
        %v385 = vld [vmem:[%s232 + $0x340] sm:$0xff]
        %v386 = vld [vmem:[%s232 + $0x348] sm:$0xff]
        %v387 = vld [vmem:[%s232 + $0x350] sm:$0xff]
        %v388 = vld [vmem:[%s232 + $0x358] sm:$0xff]
        %v389 = vld [vmem:[%s232 + $0x360] sm:$0xff]
        %v390 = vld [vmem:[%s232 + $0x368] sm:$0xff]
        %v391 = vld [vmem:[%s232 + $0x370] sm:$0xff]
        %v392 = vld [vmem:[%s232 + $0x378] sm:$0xff]
        %v393 = vld [vmem:[%s232 + $0x380] sm:$0xff]
        %v394 = vld [vmem:[%s232 + $0x388] sm:$0xff]
        %v395 = vld [vmem:[%s232 + $0x390] sm:$0xff]
        %v396 = vld [vmem:[%s232 + $0x398] sm:$0xff]
        %v397 = vld [vmem:[%s232 + $0x3a0] sm:$0xff]
        %v398 = vld [vmem:[%s232 + $0x3a8] sm:$0xff]
        %v399 = vld [vmem:[%s232 + $0x3b0] sm:$0xff]
        %v400 = vld [vmem:[%s232 + $0x3b8] sm:$0xff]
        %v401 = vld [vmem:[%s232 + $0x3c0] sm:$0xff]
        %v402 = vld [vmem:[%s232 + $0x3c8] sm:$0xff]
        %v403 = vld [vmem:[%s232 + $0x3d0] sm:$0xff]
        %v404 = vld [vmem:[%s232 + $0x3d8] sm:$0xff]
        %v405 = vld [vmem:[%s232 + $0x3e0] sm:$0xff]
        %v406 = vld [vmem:[%s232 + $0x3e8] sm:$0xff]
        %v407 = vld [vmem:[%s232 + $0x3f0] sm:$0xff]
        %v408 = vld [vmem:[%s232 + $0x3f8] sm:$0xff]
        %v409 = vld [vmem:[%s232 + $0x400] sm:$0xff]
        %v410 = vld [vmem:[%s232 + $0x408] sm:$0xff]
        %v411 = vld [vmem:[%s232 + $0x410] sm:$0xff]
        %v412 = vld [vmem:[%s232 + $0x418] sm:$0xff]
        %v413 = vld [vmem:[%s232 + $0x420] sm:$0xff]
        %v414 = vld [vmem:[%s232 + $0x428] sm:$0xff]
        %v415 = vld [vmem:[%s232 + $0x430] sm:$0xff]
        %v416 = vld [vmem:[%s232 + $0x438] sm:$0xff]
        %v417 = vld [vmem:[%s232 + $0x440] sm:$0xff]
        %v418 = vld [vmem:[%s232 + $0x448] sm:$0xff]
        %v419 = vld [vmem:[%s232 + $0x450] sm:$0xff]
        %v420 = vld [vmem:[%s232 + $0x458] sm:$0xff]
        %v421 = vld [vmem:[%s232 + $0x460] sm:$0xff]
        %v422 = vld [vmem:[%s232 + $0x468] sm:$0xff]
        %v423 = vld [vmem:[%s232 + $0x470] sm:$0xff]
        %v424 = vld [vmem:[%s232 + $0x478] sm:$0xff]
        %v425 = vld [vmem:[%s232 + $0x480] sm:$0xff]
        %v426 = vld [vmem:[%s232 + $0x488] sm:$0xff]
        %v427 = vld [vmem:[%s232 + $0x490] sm:$0xff]
        %v428 = vld [vmem:[%s232 + $0x498] sm:$0xff]
        %v429 = vld [vmem:[%s232 + $0x4a0] sm:$0xff]
        %v430 = vld [vmem:[%s232 + $0x4a8] sm:$0xff]
        %v431 = vld [vmem:[%s232 + $0x4b0] sm:$0xff]
        %v432 = vld [vmem:[%s232 + $0x4b8] sm:$0xff]
        %v433 = vld [vmem:[%s232 + $0x4c0] sm:$0xff]
        %v434 = vld [vmem:[%s232 + $0x4c8] sm:$0xff]
        %v435 = vld [vmem:[%s232 + $0x4d0] sm:$0xff]
        %v436 = vld [vmem:[%s232 + $0x4d8] sm:$0xff]
        %v437 = vld [vmem:[%s232 + $0x4e0] sm:$0xff]
        %v438 = vld [vmem:[%s232 + $0x4e8] sm:$0xff]
        %v439 = vld [vmem:[%s232 + $0x4f0] sm:$0xff]
        %v440 = vld [vmem:[%s232 + $0x4f8] sm:$0xff]
        %v441 = vld [vmem:[%s232 + $0x500] sm:$0xff]
        %v442 = vld [vmem:[%s232 + $0x508] sm:$0xff]
        %v443 = vld [vmem:[%s232 + $0x510] sm:$0xff]
        %v444 = vld [vmem:[%s232 + $0x518] sm:$0xff]
        %v445 = vld [vmem:[%s232 + $0x520] sm:$0xff]
        %v446 = vld [vmem:[%s232 + $0x528] sm:$0xff]
        %v447 = vld [vmem:[%s232 + $0x530] sm:$0xff]
        %v448 = vld [vmem:[%s232 + $0x538] sm:$0xff]
        %v449 = vld [vmem:[%s232 + $0x540] sm:$0xff]
        %v450 = vld [vmem:[%s232 + $0x548] sm:$0xff]
        %v451 = vld [vmem:[%s232 + $0x550] sm:$0xff]
        %v452 = vld [vmem:[%s232 + $0x558] sm:$0xff]
        %v453 = vld [vmem:[%s232 + $0x560] sm:$0xff]
        %v454 = vld [vmem:[%s232 + $0x568] sm:$0xff]
        %v455 = vld [vmem:[%s232 + $0x570] sm:$0xff]
        %v456 = vld [vmem:[%s232 + $0x578] sm:$0xff]
        %v457 = vld [vmem:[%s232 + $0x580] sm:$0xff]
        %v458 = vld [vmem:[%s232 + $0x588] sm:$0xff]
        %v459 = vld [vmem:[%s232 + $0x590] sm:$0xff]
        %v460 = vld [vmem:[%s232 + $0x598] sm:$0xff]
        %v461 = vld [vmem:[%s232 + $0x5a0] sm:$0xff]
        %v462 = vld [vmem:[%s232 + $0x5a8] sm:$0xff]
        %v463 = vld [vmem:[%s232 + $0x5b0] sm:$0xff]
        %v464 = vld [vmem:[%s232 + $0x5b8] sm:$0xff]
        %v465 = vld [vmem:[%s232 + $0x5c0] sm:$0xff]
        %v466 = vld [vmem:[%s232 + $0x5c8] sm:$0xff]
        %v467 = vld [vmem:[%s232 + $0x5d0] sm:$0xff]
        %v468 = vld [vmem:[%s232 + $0x5d8] sm:$0xff]
        %v469 = vld [vmem:[%s232 + $0x5e0] sm:$0xff]
        %v470 = vld [vmem:[%s232 + $0x5e8] sm:$0xff]
        %v471 = vld [vmem:[%s232 + $0x5f0] sm:$0xff]
        %v472 = vld [vmem:[%s232 + $0x5f8] sm:$0xff]
        %v473 = vld [vmem:[%s232 + $0x600] sm:$0xff]
        %v474 = vld [vmem:[%s232 + $0x608] sm:$0xff]
        %v475 = vld [vmem:[%s232 + $0x610] sm:$0xff]
        %v476 = vld [vmem:[%s232 + $0x618] sm:$0xff]
        %v477 = vld [vmem:[%s232 + $0x620] sm:$0xff]
        %v478 = vld [vmem:[%s232 + $0x628] sm:$0xff]
        %v479 = vld [vmem:[%s232 + $0x630] sm:$0xff]
        %v480 = vld [vmem:[%s232 + $0x638] sm:$0xff]
        %v481 = vld [vmem:[%s232 + $0x640] sm:$0xff]
        %v482 = vld [vmem:[%s232 + $0x648] sm:$0xff]
        %v483 = vld [vmem:[%s232 + $0x650] sm:$0xff]
        %v484 = vld [vmem:[%s232 + $0x658] sm:$0xff]
        %v485 = vld [vmem:[%s232 + $0x660] sm:$0xff]
        %v486 = vld [vmem:[%s232 + $0x668] sm:$0xff]
        %v487 = vld [vmem:[%s232 + $0x670] sm:$0xff]
        %v488 = vld [vmem:[%s232 + $0x678] sm:$0xff]
        %v489 = vld [vmem:[%s232 + $0x680] sm:$0xff]
        %v490 = vld [vmem:[%s232 + $0x688] sm:$0xff]
        %v491 = vld [vmem:[%s232 + $0x690] sm:$0xff]
        %v492 = vld [vmem:[%s232 + $0x698] sm:$0xff]
        %v493 = vld [vmem:[%s232 + $0x6a0] sm:$0xff]
        %v494 = vld [vmem:[%s232 + $0x6a8] sm:$0xff]
        %v495 = vld [vmem:[%s232 + $0x6b0] sm:$0xff]
        %v496 = vld [vmem:[%s232 + $0x6b8] sm:$0xff]
        %v497 = vld [vmem:[%s232 + $0x6c0] sm:$0xff]
        %v498 = vld [vmem:[%s232 + $0x6c8] sm:$0xff]
        %v499 = vld [vmem:[%s232 + $0x6d0] sm:$0xff]
        %v500 = vld [vmem:[%s232 + $0x6d8] sm:$0xff]
        %v501 = vld [vmem:[%s232 + $0x6e0] sm:$0xff]
        %v502 = vld [vmem:[%s232 + $0x6e8] sm:$0xff]
        %v503 = vld [vmem:[%s232 + $0x6f0] sm:$0xff]
        %v504 = vld [vmem:[%s232 + $0x6f8] sm:$0xff]
        %v505 = vld [vmem:[%s232 + $0x700] sm:$0xff]
        %v506 = vld [vmem:[%s232 + $0x708] sm:$0xff]
        %v507 = vld [vmem:[%s232 + $0x710] sm:$0xff]
        %v508 = vld [vmem:[%s232 + $0x718] sm:$0xff]
        %v509 = vld [vmem:[%s232 + $0x720] sm:$0xff]
        %v510 = vld [vmem:[%s232 + $0x728] sm:$0xff]
        %v511 = vld [vmem:[%s232 + $0x730] sm:$0xff]
        %v512 = vld [vmem:[%s232 + $0x738] sm:$0xff]
        %v513 = vld [vmem:[%s232 + $0x740] sm:$0xff]
        %v514 = vld [vmem:[%s232 + $0x748] sm:$0xff]
        %v515 = vld [vmem:[%s232 + $0x750] sm:$0xff]
        %v516 = vld [vmem:[%s232 + $0x758] sm:$0xff]
        %v517 = vld [vmem:[%s232 + $0x760] sm:$0xff]
        %v518 = vld [vmem:[%s232 + $0x768] sm:$0xff]
        %v519 = vld [vmem:[%s232 + $0x770] sm:$0xff]
        %v520 = vld [vmem:[%s232 + $0x778] sm:$0xff]
        %v521 = vld [vmem:[%s232 + $0x780] sm:$0xff]
        %v522 = vld [vmem:[%s232 + $0x788] sm:$0xff]
        %v523 = vld [vmem:[%s232 + $0x790] sm:$0xff]
        %v524 = vld [vmem:[%s232 + $0x798] sm:$0xff]
        %v525 = vld [vmem:[%s232 + $0x7a0] sm:$0xff]
        %v526 = vld [vmem:[%s232 + $0x7a8] sm:$0xff]
        %v527 = vld [vmem:[%s232 + $0x7b0] sm:$0xff]
        %v528 = vld [vmem:[%s232 + $0x7b8] sm:$0xff]
        %v529 = vld [vmem:[%s232 + $0x7c0] sm:$0xff]
        %v530 = vld [vmem:[%s232 + $0x7c8] sm:$0xff]
        %v531 = vld [vmem:[%s232 + $0x7d0] sm:$0xff]
        %v532 = vld [vmem:[%s232 + $0x7d8] sm:$0xff]
        %v533 = vld [vmem:[%s232 + $0x7e0] sm:$0xff]
        %v534 = vld [vmem:[%s232 + $0x7e8] sm:$0xff]
        %v535 = vld [vmem:[%s232 + $0x7f0] sm:$0xff]
        %v536 = vld [vmem:[%s232 + $0x7f8] sm:$0xff]
        %v537 = vld [vmem:[%s232 + $0x800] sm:$0xff]
        %v538 = vld [vmem:[%s232 + $0x808] sm:$0xff]
        %v539 = vld [vmem:[%s232 + $0x810] sm:$0xff]
        %v540 = vld [vmem:[%s232 + $0x818] sm:$0xff]
        %v541 = vld [vmem:[%s232 + $0x820] sm:$0xff]
        %v542 = vld [vmem:[%s232 + $0x828] sm:$0xff]
        %v543 = vld [vmem:[%s232 + $0x830] sm:$0xff]
        %v544 = vld [vmem:[%s232 + $0x838] sm:$0xff]
        %v545 = vld [vmem:[%s232 + $0x840] sm:$0xff]
        %v546 = vld [vmem:[%s232 + $0x848] sm:$0xff]
        %v547 = vld [vmem:[%s232 + $0x850] sm:$0xff]
        %v548 = vld [vmem:[%s232 + $0x858] sm:$0xff]
        %v549 = vld [vmem:[%s232 + $0x860] sm:$0xff]
        %v550 = vld [vmem:[%s232 + $0x868] sm:$0xff]
        %v551 = vld [vmem:[%s232 + $0x870] sm:$0xff]
        %v552 = vld [vmem:[%s232 + $0x878] sm:$0xff]
        %v553 = vld [vmem:[%s232 + $0x880] sm:$0xff]
        %v554 = vld [vmem:[%s232 + $0x888] sm:$0xff]
        %v555 = vld [vmem:[%s232 + $0x890] sm:$0xff]
        %v556 = vld [vmem:[%s232 + $0x898] sm:$0xff]
        %v557 = vld [vmem:[%s232 + $0x8a0] sm:$0xff]
        %v558 = vld [vmem:[%s232 + $0x8a8] sm:$0xff]
        %v559 = vld [vmem:[%s232 + $0x8b0] sm:$0xff]
        %v560 = vld [vmem:[%s232 + $0x8b8] sm:$0xff]
        %v561 = vld [vmem:[%s232 + $0x8c0] sm:$0xff]
        %v562 = vld [vmem:[%s232 + $0x8c8] sm:$0xff]
        %v563 = vld [vmem:[%s232 + $0x8d0] sm:$0xff]
        %v564 = vld [vmem:[%s232 + $0x8d8] sm:$0xff]
        %v565 = vld [vmem:[%s232 + $0x8e0] sm:$0xff]
        %v566 = vld [vmem:[%s232 + $0x8e8] sm:$0xff]
        %v567 = vld [vmem:[%s232 + $0x8f0] sm:$0xff]
        %v568 = vld [vmem:[%s232 + $0x8f8] sm:$0xff]
        %v569 = vld [vmem:[%s232 + $0x900] sm:$0xff]
        %v570 = vld [vmem:[%s232 + $0x908] sm:$0xff]
        %v571 = vld [vmem:[%s232 + $0x910] sm:$0xff]
        %v572 = vld [vmem:[%s232 + $0x918] sm:$0xff]
        %v573 = vld [vmem:[%s232 + $0x920] sm:$0xff]
        %v574 = vld [vmem:[%s232 + $0x928] sm:$0xff]
        %v575 = vld [vmem:[%s232 + $0x930] sm:$0xff]
        %v576 = vld [vmem:[%s232 + $0x938] sm:$0xff]
        %v577 = vld [vmem:[%s232 + $0x940] sm:$0xff]
        %v578 = vld [vmem:[%s232 + $0x948] sm:$0xff]
        %v579 = vld [vmem:[%s232 + $0x950] sm:$0xff]
        %v580 = vld [vmem:[%s232 + $0x958] sm:$0xff]
        %v581 = vld [vmem:[%s232 + $0x960] sm:$0xff]
        %v582 = vld [vmem:[%s232 + $0x968] sm:$0xff]
        %v583 = vld [vmem:[%s232 + $0x970] sm:$0xff]
        %v584 = vld [vmem:[%s232 + $0x978] sm:$0xff]
        %v585 = vld [vmem:[%s232 + $0x980] sm:$0xff]
        %v586 = vld [vmem:[%s232 + $0x988] sm:$0xff]
        %v587 = vld [vmem:[%s232 + $0x990] sm:$0xff]
        %v588 = vld [vmem:[%s232 + $0x998] sm:$0xff]
        %v589 = vld [vmem:[%s232 + $0x9a0] sm:$0xff]
        %v590 = vld [vmem:[%s232 + $0x9a8] sm:$0xff]
        %v591 = vld [vmem:[%s232 + $0x9b0] sm:$0xff]
        %v592 = vld [vmem:[%s232 + $0x9b8] sm:$0xff]
        %v593 = vld [vmem:[%s232 + $0x9c0] sm:$0xff]
        %v594 = vld [vmem:[%s232 + $0x9c8] sm:$0xff]
        %v595 = vld [vmem:[%s232 + $0x9d0] sm:$0xff]
        %v596 = vld [vmem:[%s232 + $0x9d8] sm:$0xff]
        %v597 = vld [vmem:[%s232 + $0x9e0] sm:$0xff]
        %v598 = vld [vmem:[%s232 + $0x9e8] sm:$0xff]
        %v599 = vld [vmem:[%s232 + $0x9f0] sm:$0xff]
        %v600 = vld [vmem:[%s232 + $0x9f8] sm:$0xff]
        %v601 = vld [vmem:[%s232 + $0xa00] sm:$0xff]
        %v602 = vld [vmem:[%s232 + $0xa08] sm:$0xff]
        %v603 = vld [vmem:[%s232 + $0xa10] sm:$0xff]
        %v604 = vld [vmem:[%s232 + $0xa18] sm:$0xff]
        %v605 = vld [vmem:[%s232 + $0xa20] sm:$0xff]
        %v606 = vld [vmem:[%s232 + $0xa28] sm:$0xff]
        %v607 = vld [vmem:[%s232 + $0xa30] sm:$0xff]
        %v608 = vld [vmem:[%s232 + $0xa38] sm:$0xff]
        %v609 = vld [vmem:[%s232 + $0xa40] sm:$0xff]
        %v610 = vld [vmem:[%s232 + $0xa48] sm:$0xff]
        %v611 = vld [vmem:[%s232 + $0xa50] sm:$0xff]
        %v612 = vld [vmem:[%s232 + $0xa58] sm:$0xff]
        %v613 = vld [vmem:[%s232 + $0xa60] sm:$0xff]
        %v614 = vld [vmem:[%s232 + $0xa68] sm:$0xff]
        %v615 = vld [vmem:[%s232 + $0xa70] sm:$0xff]
        %v616 = vld [vmem:[%s232 + $0xa78] sm:$0xff]
        %v617 = vld [vmem:[%s232 + $0xa80] sm:$0xff]
        %v618 = vld [vmem:[%s232 + $0xa88] sm:$0xff]
        %v619 = vld [vmem:[%s232 + $0xa90] sm:$0xff]
        %v620 = vld [vmem:[%s232 + $0xa98] sm:$0xff]
        %v621 = vld [vmem:[%s232 + $0xaa0] sm:$0xff]
        %v622 = vld [vmem:[%s232 + $0xaa8] sm:$0xff]
        %v623 = vld [vmem:[%s232 + $0xab0] sm:$0xff]
        %v624 = vld [vmem:[%s232 + $0xab8] sm:$0xff]
        %v625 = vld [vmem:[%s232 + $0xac0] sm:$0xff]
        %v626 = vld [vmem:[%s232 + $0xac8] sm:$0xff]
        %v627 = vld [vmem:[%s232 + $0xad0] sm:$0xff]
        %v628 = vld [vmem:[%s232 + $0xad8] sm:$0xff]
        %v629 = vld [vmem:[%s232 + $0xae0] sm:$0xff]
        %v630 = vld [vmem:[%s232 + $0xae8] sm:$0xff]
        %v631 = vld [vmem:[%s232 + $0xaf0] sm:$0xff]
        %v632 = vld [vmem:[%s232 + $0xaf8] sm:$0xff]
        %v633 = vld [vmem:[%s232 + $0xb00] sm:$0xff]
        %v634 = vld [vmem:[%s232 + $0xb08] sm:$0xff]
        %v635 = vld [vmem:[%s232 + $0xb10] sm:$0xff]
        %v636 = vld [vmem:[%s232 + $0xb18] sm:$0xff]
        %v637 = vld [vmem:[%s232 + $0xb20] sm:$0xff]
        %v638 = vld [vmem:[%s232 + $0xb28] sm:$0xff]
        %v639 = vld [vmem:[%s232 + $0xb30] sm:$0xff]
        %v640 = vld [vmem:[%s232 + $0xb38] sm:$0xff]
        %v641 = vld [vmem:[%s232 + $0xb40] sm:$0xff]
        %v642 = vld [vmem:[%s232 + $0xb48] sm:$0xff]
        %v643 = vld [vmem:[%s232 + $0xb50] sm:$0xff]
        %v644 = vld [vmem:[%s232 + $0xb58] sm:$0xff]
        %v645 = vld [vmem:[%s232 + $0xb60] sm:$0xff]
        %v646 = vld [vmem:[%s232 + $0xb68] sm:$0xff]
        %v647 = vld [vmem:[%s232 + $0xb70] sm:$0xff]
        %v648 = vld [vmem:[%s232 + $0xb78] sm:$0xff]
        %v649 = vld [vmem:[%s232 + $0xb80] sm:$0xff]
        %v650 = vld [vmem:[%s232 + $0xb88] sm:$0xff]
        %v651 = vld [vmem:[%s232 + $0xb90] sm:$0xff]
        %v652 = vld [vmem:[%s232 + $0xb98] sm:$0xff]
        %v653 = vld [vmem:[%s232 + $0xba0] sm:$0xff]
        %v654 = vld [vmem:[%s232 + $0xba8] sm:$0xff]
        %v655 = vld [vmem:[%s232 + $0xbb0] sm:$0xff]
        %v656 = vld [vmem:[%s232 + $0xbb8] sm:$0xff]
        %v657 = vld [vmem:[%s232 + $0xbc0] sm:$0xff]
        %v658 = vld [vmem:[%s232 + $0xbc8] sm:$0xff]
        %v659 = vld [vmem:[%s232 + $0xbd0] sm:$0xff]
        %v660 = vld [vmem:[%s232 + $0xbd8] sm:$0xff]
        %v661 = vld [vmem:[%s232 + $0xbe0] sm:$0xff]
        %v662 = vld [vmem:[%s232 + $0xbe8] sm:$0xff]
        %v663 = vld [vmem:[%s232 + $0xbf0] sm:$0xff]
        %v664 = vld [vmem:[%s232 + $0xbf8] sm:$0xff]
        %v665 = vld [vmem:[%s232 + $0xc00] sm:$0xff]
        %v666 = vld [vmem:[%s232 + $0xc08] sm:$0xff]
        %v667 = vld [vmem:[%s232 + $0xc10] sm:$0xff]
        %v668 = vld [vmem:[%s232 + $0xc18] sm:$0xff]
        %v669 = vld [vmem:[%s232 + $0xc20] sm:$0xff]
        %v670 = vld [vmem:[%s232 + $0xc28] sm:$0xff]
        %v671 = vld [vmem:[%s232 + $0xc30] sm:$0xff]
        %v672 = vld [vmem:[%s232 + $0xc38] sm:$0xff]
        %v673 = vld [vmem:[%s232 + $0xc40] sm:$0xff]
        %v674 = vld [vmem:[%s232 + $0xc48] sm:$0xff]
        %v675 = vld [vmem:[%s232 + $0xc50] sm:$0xff]
        %v676 = vld [vmem:[%s232 + $0xc58] sm:$0xff]
        %v677 = vld [vmem:[%s232 + $0xc60] sm:$0xff]
        %v678 = vld [vmem:[%s232 + $0xc68] sm:$0xff]
        %v679 = vld [vmem:[%s232 + $0xc70] sm:$0xff]
        %v680 = vld [vmem:[%s232 + $0xc78] sm:$0xff]
        %v681 = vld [vmem:[%s232 + $0xc80] sm:$0xff]
        %v682 = vld [vmem:[%s232 + $0xc88] sm:$0xff]
        %v683 = vld [vmem:[%s232 + $0xc90] sm:$0xff]
        %v684 = vld [vmem:[%s232 + $0xc98] sm:$0xff]
        %v685 = vld [vmem:[%s232 + $0xca0] sm:$0xff]
        %v686 = vld [vmem:[%s232 + $0xca8] sm:$0xff]
        %v687 = vld [vmem:[%s232 + $0xcb0] sm:$0xff]
        %v688 = vld [vmem:[%s232 + $0xcb8] sm:$0xff]
        %v689 = vld [vmem:[%s232 + $0xcc0] sm:$0xff]
        %v690 = vld [vmem:[%s232 + $0xcc8] sm:$0xff]
        %v691 = vld [vmem:[%s232 + $0xcd0] sm:$0xff]
        %v692 = vld [vmem:[%s232 + $0xcd8] sm:$0xff]
        %v693 = vld [vmem:[%s232 + $0xce0] sm:$0xff]
        %v694 = vld [vmem:[%s232 + $0xce8] sm:$0xff]
        %v695 = vld [vmem:[%s232 + $0xcf0] sm:$0xff]
        %v696 = vld [vmem:[%s232 + $0xcf8] sm:$0xff]
        %v697 = vld [vmem:[%s232 + $0xd00] sm:$0xff]
        %v698 = vld [vmem:[%s232 + $0xd08] sm:$0xff]
        %v699 = vld [vmem:[%s232 + $0xd10] sm:$0xff]
        %v700 = vld [vmem:[%s232 + $0xd18] sm:$0xff]
        %v701 = vld [vmem:[%s232 + $0xd20] sm:$0xff]
        %v702 = vld [vmem:[%s232 + $0xd28] sm:$0xff]
        %v703 = vld [vmem:[%s232 + $0xd30] sm:$0xff]
        %v704 = vld [vmem:[%s232 + $0xd38] sm:$0xff]
        %v705 = vld [vmem:[%s232 + $0xd40] sm:$0xff]
        %v706 = vld [vmem:[%s232 + $0xd48] sm:$0xff]
        %v707 = vld [vmem:[%s232 + $0xd50] sm:$0xff]
        %v708 = vld [vmem:[%s232 + $0xd58] sm:$0xff]
        %v709 = vld [vmem:[%s232 + $0xd60] sm:$0xff]
        %v710 = vld [vmem:[%s232 + $0xd68] sm:$0xff]
        %v711 = vld [vmem:[%s232 + $0xd70] sm:$0xff]
        %v712 = vld [vmem:[%s232 + $0xd78] sm:$0xff]
        %v713 = vld [vmem:[%s232 + $0xd80] sm:$0xff]
        %v714 = vld [vmem:[%s232 + $0xd88] sm:$0xff]
        %v715 = vld [vmem:[%s232 + $0xd90] sm:$0xff]
        %v716 = vld [vmem:[%s232 + $0xd98] sm:$0xff]
        %v717 = vld [vmem:[%s232 + $0xda0] sm:$0xff]
        %v718 = vld [vmem:[%s232 + $0xda8] sm:$0xff]
        %v719 = vld [vmem:[%s232 + $0xdb0] sm:$0xff]
        %v720 = vld [vmem:[%s232 + $0xdb8] sm:$0xff]
        %v721 = vld [vmem:[%s232 + $0xdc0] sm:$0xff]
        %v722 = vld [vmem:[%s232 + $0xdc8] sm:$0xff]
        %v723 = vld [vmem:[%s232 + $0xdd0] sm:$0xff]
        %v724 = vld [vmem:[%s232 + $0xdd8] sm:$0xff]
        %v725 = vld [vmem:[%s232 + $0xde0] sm:$0xff]
        %v726 = vld [vmem:[%s232 + $0xde8] sm:$0xff]
        %v727 = vld [vmem:[%s232 + $0xdf0] sm:$0xff]
        %v728 = vld [vmem:[%s232 + $0xdf8] sm:$0xff]
        %v729 = vld [vmem:[%s232 + $0xe00] sm:$0xff]
        %v730 = vld [vmem:[%s232 + $0xe08] sm:$0xff]
        %v731 = vld [vmem:[%s232 + $0xe10] sm:$0xff]
        %v732 = vld [vmem:[%s232 + $0xe18] sm:$0xff]
        %v733 = vld [vmem:[%s232 + $0xe20] sm:$0xff]
        %v734 = vld [vmem:[%s232 + $0xe28] sm:$0xff]
        %v735 = vld [vmem:[%s232 + $0xe30] sm:$0xff]
        %v736 = vld [vmem:[%s232 + $0xe38] sm:$0xff]
        %v737 = vld [vmem:[%s232 + $0xe40] sm:$0xff]
        %v738 = vld [vmem:[%s232 + $0xe48] sm:$0xff]
        %v739 = vld [vmem:[%s232 + $0xe50] sm:$0xff]
        %v740 = vld [vmem:[%s232 + $0xe58] sm:$0xff]
        %v741 = vld [vmem:[%s232 + $0xe60] sm:$0xff]
        %v742 = vld [vmem:[%s232 + $0xe68] sm:$0xff]
        %v743 = vld [vmem:[%s232 + $0xe70] sm:$0xff]
        %v744 = vld [vmem:[%s232 + $0xe78] sm:$0xff]
        %v745 = vld [vmem:[%s232 + $0xe80] sm:$0xff]
        %v746 = vld [vmem:[%s232 + $0xe88] sm:$0xff]
        %v747 = vld [vmem:[%s232 + $0xe90] sm:$0xff]
        %v748 = vld [vmem:[%s232 + $0xe98] sm:$0xff]
        %v749 = vld [vmem:[%s232 + $0xea0] sm:$0xff]
        %v750 = vld [vmem:[%s232 + $0xea8] sm:$0xff]
        %v751 = vld [vmem:[%s232 + $0xeb0] sm:$0xff]
        %v752 = vld [vmem:[%s232 + $0xeb8] sm:$0xff]
        %v753 = vld [vmem:[%s232 + $0xec0] sm:$0xff]
        %v754 = vld [vmem:[%s232 + $0xec8] sm:$0xff]
        %v755 = vld [vmem:[%s232 + $0xed0] sm:$0xff]
        %v756 = vld [vmem:[%s232 + $0xed8] sm:$0xff]
        %v757 = vld [vmem:[%s232 + $0xee0] sm:$0xff]
        %v758 = vld [vmem:[%s232 + $0xee8] sm:$0xff]
        %v759 = vld [vmem:[%s232 + $0xef0] sm:$0xff]
        %v760 = vld [vmem:[%s232 + $0xef8] sm:$0xff]
        %v761 = vld [vmem:[%s232 + $0xf00] sm:$0xff]
        %v762 = vld [vmem:[%s232 + $0xf08] sm:$0xff]
        %v763 = vld [vmem:[%s232 + $0xf10] sm:$0xff]
        %v764 = vld [vmem:[%s232 + $0xf18] sm:$0xff]
        %v765 = vld [vmem:[%s232 + $0xf20] sm:$0xff]
        %v766 = vld [vmem:[%s232 + $0xf28] sm:$0xff]
        %v767 = vld [vmem:[%s232 + $0xf30] sm:$0xff]
        %v768 = vld [vmem:[%s232 + $0xf38] sm:$0xff]
        %v769 = vld [vmem:[%s232 + $0xf40] sm:$0xff]
        %v770 = vld [vmem:[%s232 + $0xf48] sm:$0xff]
        %v771 = vld [vmem:[%s232 + $0xf50] sm:$0xff]
        %v772 = vld [vmem:[%s232 + $0xf58] sm:$0xff]
        %v773 = vld [vmem:[%s232 + $0xf60] sm:$0xff]
        %v774 = vld [vmem:[%s232 + $0xf68] sm:$0xff]
        %v775 = vld [vmem:[%s232 + $0xf70] sm:$0xff]
        %v776 = vld [vmem:[%s232 + $0xf78] sm:$0xff]
        %v777 = vld [vmem:[%s232 + $0xf80] sm:$0xff]
        %v778 = vld [vmem:[%s232 + $0xf88] sm:$0xff]
        %v779 = vld [vmem:[%s232 + $0xf90] sm:$0xff]
        %v780 = vld [vmem:[%s232 + $0xf98] sm:$0xff]
        %v781 = vld [vmem:[%s232 + $0xfa0] sm:$0xff]
        %v782 = vld [vmem:[%s232 + $0xfa8] sm:$0xff]
        %v783 = vld [vmem:[%s232 + $0xfb0] sm:$0xff]
        %v784 = vld [vmem:[%s232 + $0xfb8] sm:$0xff]
        %v785 = vld [vmem:[%s232 + $0xfc0] sm:$0xff]
        %v786 = vld [vmem:[%s232 + $0xfc8] sm:$0xff]
        %v787 = vld [vmem:[%s232 + $0xfd0] sm:$0xff]
        %v788 = vld [vmem:[%s232 + $0xfd8] sm:$0xff]
        %v789 = vld [vmem:[%s232 + $0xfe0] sm:$0xff]
        %v790 = vld [vmem:[%s232 + $0xfe8] sm:$0xff]
        %v791 = vld [vmem:[%s232 + $0xff0] sm:$0xff]
        %v792 = vld [vmem:[%s232 + $0xff8] sm:$0xff]
        %794 = vst [vmem:[#allocation1] ss:$4 sm:$0xff] %v280
        %v795 = vld.sshfl [vmem:[#allocation1] sm:$0xff pattern:$0x73625140]
        %v796 = vld.sshfl [vmem:[#allocation1 + $0x8] sm:$0xff pattern:$0x73625140]
        %v797 = vld.sshfl [vmem:[#allocation1 + $0x10] sm:$0xff pattern:$0x73625140]
        %v798 = vld.sshfl [vmem:[#allocation1 + $0x18] sm:$0xff pattern:$0x73625140]
        %803 = vmatpush.msra.mxu0 %v401
        %804 = vmatpush.msra.mxu0 %v393
        %805 = vmatpush.msra.mxu0 %v385
        %806 = vmatpush.msra.mxu0 %v377
        %807 = vmatpush.msra.mxu0 %v369
        %808 = vmatpush.msra.mxu0 %v361
        %809 = vmatpush.msra.mxu0 %v353
        %810 = vmatpush.msra.mxu0 %v345
        %811 = vmatpush.msra.mxu0 %v337
        %812 = vmatpush.msra.mxu0 %v329
        %813 = vmatpush.msra.mxu0 %v321
        %814 = vmatpush.msra.mxu0 %v313
        %815 = vmatpush.msra.mxu0 %v305
        %816 = vmatpush.msra.mxu0 %v297
        %817 = vmatpush.msra.mxu0 %v289
        %818 = vmatpush.msra.mxu0 %v281
        %819 = vmatmul.f32.gmra.mxu0 %v795
        %v820 = vpop.f32.mrf.mxu0
        %v821 = vadd.f32 0.0, %v820
        %822 = vdwg.mxu0
        %823 = vmatpush.msra.mxu0 %v529
        %824 = vmatpush.msra.mxu0 %v521
        %825 = vmatpush.msra.mxu0 %v513
        %826 = vmatpush.msra.mxu0 %v505
        %827 = vmatpush.msra.mxu0 %v497
        %828 = vmatpush.msra.mxu0 %v489
        %829 = vmatpush.msra.mxu0 %v481
        %830 = vmatpush.msra.mxu0 %v473
        %831 = vmatpush.msra.mxu0 %v465
        %832 = vmatpush.msra.mxu0 %v457
        %833 = vmatpush.msra.mxu0 %v449
        %834 = vmatpush.msra.mxu0 %v441
        %835 = vmatpush.msra.mxu0 %v433
        %836 = vmatpush.msra.mxu0 %v425
        %837 = vmatpush.msra.mxu0 %v417
        %838 = vmatpush.msra.mxu0 %v409
        %839 = vmatmul.f32.gmra.mxu0 %v796
        %v840 = vpop.f32.mrf.mxu0
        %v841 = vadd.f32 %v821, %v840
        %842 = vdwg.mxu0
        %843 = vmatpush.msra.mxu0 %v657
        %844 = vmatpush.msra.mxu0 %v649
        %845 = vmatpush.msra.mxu0 %v641
        %846 = vmatpush.msra.mxu0 %v633
        %847 = vmatpush.msra.mxu0 %v625
        %848 = vmatpush.msra.mxu0 %v617
        %849 = vmatpush.msra.mxu0 %v609
        %850 = vmatpush.msra.mxu0 %v601
        %851 = vmatpush.msra.mxu0 %v593
        %852 = vmatpush.msra.mxu0 %v585
        %853 = vmatpush.msra.mxu0 %v577
        %854 = vmatpush.msra.mxu0 %v569
        %855 = vmatpush.msra.mxu0 %v561
        %856 = vmatpush.msra.mxu0 %v553
        %857 = vmatpush.msra.mxu0 %v545
        %858 = vmatpush.msra.mxu0 %v537
        %859 = vmatmul.f32.gmra.mxu0 %v797
        %v860 = vpop.f32.mrf.mxu0
        %v861 = vadd.f32 %v841, %v860
        %862 = vdwg.mxu0
        %863 = vmatpush.msra.mxu0 %v785
        %864 = vmatpush.msra.mxu0 %v777
        %865 = vmatpush.msra.mxu0 %v769
        %866 = vmatpush.msra.mxu0 %v761
        %867 = vmatpush.msra.mxu0 %v753
        %868 = vmatpush.msra.mxu0 %v745
        %869 = vmatpush.msra.mxu0 %v737
        %870 = vmatpush.msra.mxu0 %v729
        %871 = vmatpush.msra.mxu0 %v721
        %872 = vmatpush.msra.mxu0 %v713
        %873 = vmatpush.msra.mxu0 %v705
        %874 = vmatpush.msra.mxu0 %v697
        %875 = vmatpush.msra.mxu0 %v689
        %876 = vmatpush.msra.mxu0 %v681
        %877 = vmatpush.msra.mxu0 %v673
        %878 = vmatpush.msra.mxu0 %v665
        %879 = vmatmul.f32.gmra.mxu0 %v798
        %v880 = vpop.f32.mrf.mxu0
        %v881 = vadd.f32 %v861, %v880
        %882 = vdwg.mxu0
        %883 = vmatpush.msra.mxu0 %v402
        %884 = vmatpush.msra.mxu0 %v394
        %885 = vmatpush.msra.mxu0 %v386
        %886 = vmatpush.msra.mxu0 %v378
        %887 = vmatpush.msra.mxu0 %v370
        %888 = vmatpush.msra.mxu0 %v362
        %889 = vmatpush.msra.mxu0 %v354
        %890 = vmatpush.msra.mxu0 %v346
        %891 = vmatpush.msra.mxu0 %v338
        %892 = vmatpush.msra.mxu0 %v330
        %893 = vmatpush.msra.mxu0 %v322
        %894 = vmatpush.msra.mxu0 %v314
        %895 = vmatpush.msra.mxu0 %v306
        %896 = vmatpush.msra.mxu0 %v298
        %897 = vmatpush.msra.mxu0 %v290
        %898 = vmatpush.msra.mxu0 %v282
        %899 = vmatmul.f32.gmra.mxu0 %v795
        %v900 = vpop.f32.mrf.mxu0
        %v901 = vadd.f32 0.0, %v900
        %902 = vdwg.mxu0
        %903 = vmatpush.msra.mxu0 %v530
        %904 = vmatpush.msra.mxu0 %v522
        %905 = vmatpush.msra.mxu0 %v514
        %906 = vmatpush.msra.mxu0 %v506
        %907 = vmatpush.msra.mxu0 %v498
        %908 = vmatpush.msra.mxu0 %v490
        %909 = vmatpush.msra.mxu0 %v482
        %910 = vmatpush.msra.mxu0 %v474
        %911 = vmatpush.msra.mxu0 %v466
        %912 = vmatpush.msra.mxu0 %v458
        %913 = vmatpush.msra.mxu0 %v450
        %914 = vmatpush.msra.mxu0 %v442
        %915 = vmatpush.msra.mxu0 %v434
        %916 = vmatpush.msra.mxu0 %v426
        %917 = vmatpush.msra.mxu0 %v418
        %918 = vmatpush.msra.mxu0 %v410
        %919 = vmatmul.f32.gmra.mxu0 %v796
        %v920 = vpop.f32.mrf.mxu0
        %v921 = vadd.f32 %v901, %v920
        %922 = vdwg.mxu0
        %923 = vmatpush.msra.mxu0 %v658
        %924 = vmatpush.msra.mxu0 %v650
        %925 = vmatpush.msra.mxu0 %v642
        %926 = vmatpush.msra.mxu0 %v634
        %927 = vmatpush.msra.mxu0 %v626
        %928 = vmatpush.msra.mxu0 %v618
        %929 = vmatpush.msra.mxu0 %v610
        %930 = vmatpush.msra.mxu0 %v602
        %931 = vmatpush.msra.mxu0 %v594
        %932 = vmatpush.msra.mxu0 %v586
        %933 = vmatpush.msra.mxu0 %v578
        %934 = vmatpush.msra.mxu0 %v570
        %935 = vmatpush.msra.mxu0 %v562
        %936 = vmatpush.msra.mxu0 %v554
        %937 = vmatpush.msra.mxu0 %v546
        %938 = vmatpush.msra.mxu0 %v538
        %939 = vmatmul.f32.gmra.mxu0 %v797
        %v940 = vpop.f32.mrf.mxu0
        %v941 = vadd.f32 %v921, %v940
        %942 = vdwg.mxu0
        %943 = vmatpush.msra.mxu0 %v786
        %944 = vmatpush.msra.mxu0 %v778
        %945 = vmatpush.msra.mxu0 %v770
        %946 = vmatpush.msra.mxu0 %v762
        %947 = vmatpush.msra.mxu0 %v754
        %948 = vmatpush.msra.mxu0 %v746
        %949 = vmatpush.msra.mxu0 %v738
        %950 = vmatpush.msra.mxu0 %v730
        %951 = vmatpush.msra.mxu0 %v722
        %952 = vmatpush.msra.mxu0 %v714
        %953 = vmatpush.msra.mxu0 %v706
        %954 = vmatpush.msra.mxu0 %v698
        %955 = vmatpush.msra.mxu0 %v690
        %956 = vmatpush.msra.mxu0 %v682
        %957 = vmatpush.msra.mxu0 %v674
        %958 = vmatpush.msra.mxu0 %v666
        %959 = vmatmul.f32.gmra.mxu0 %v798
        %v960 = vpop.f32.mrf.mxu0
        %v961 = vadd.f32 %v941, %v960
        %962 = vdwg.mxu0
        %963 = vmatpush.msra.mxu0 %v403
        %964 = vmatpush.msra.mxu0 %v395
        %965 = vmatpush.msra.mxu0 %v387
        %966 = vmatpush.msra.mxu0 %v379
        %967 = vmatpush.msra.mxu0 %v371
        %968 = vmatpush.msra.mxu0 %v363
        %969 = vmatpush.msra.mxu0 %v355
        %970 = vmatpush.msra.mxu0 %v347
        %971 = vmatpush.msra.mxu0 %v339
        %972 = vmatpush.msra.mxu0 %v331
        %973 = vmatpush.msra.mxu0 %v323
        %974 = vmatpush.msra.mxu0 %v315
        %975 = vmatpush.msra.mxu0 %v307
        %976 = vmatpush.msra.mxu0 %v299
        %977 = vmatpush.msra.mxu0 %v291
        %978 = vmatpush.msra.mxu0 %v283
        %979 = vmatmul.f32.gmra.mxu0 %v795
        %v980 = vpop.f32.mrf.mxu0
        %v981 = vadd.f32 0.0, %v980
        %982 = vdwg.mxu0
        %983 = vmatpush.msra.mxu0 %v531
        %984 = vmatpush.msra.mxu0 %v523
        %985 = vmatpush.msra.mxu0 %v515
        %986 = vmatpush.msra.mxu0 %v507
        %987 = vmatpush.msra.mxu0 %v499
        %988 = vmatpush.msra.mxu0 %v491
        %989 = vmatpush.msra.mxu0 %v483
        %990 = vmatpush.msra.mxu0 %v475
        %991 = vmatpush.msra.mxu0 %v467
        %992 = vmatpush.msra.mxu0 %v459
        %993 = vmatpush.msra.mxu0 %v451
        %994 = vmatpush.msra.mxu0 %v443
        %995 = vmatpush.msra.mxu0 %v435
        %996 = vmatpush.msra.mxu0 %v427
        %997 = vmatpush.msra.mxu0 %v419
        %998 = vmatpush.msra.mxu0 %v411
        %999 = vmatmul.f32.gmra.mxu0 %v796
        %v1000 = vpop.f32.mrf.mxu0
        %v1001 = vadd.f32 %v981, %v1000
        %1002 = vdwg.mxu0
        %1003 = vmatpush.msra.mxu0 %v659
        %1004 = vmatpush.msra.mxu0 %v651
        %1005 = vmatpush.msra.mxu0 %v643
        %1006 = vmatpush.msra.mxu0 %v635
        %1007 = vmatpush.msra.mxu0 %v627
        %1008 = vmatpush.msra.mxu0 %v619
        %1009 = vmatpush.msra.mxu0 %v611
        %1010 = vmatpush.msra.mxu0 %v603
        %1011 = vmatpush.msra.mxu0 %v595
        %1012 = vmatpush.msra.mxu0 %v587
        %1013 = vmatpush.msra.mxu0 %v579
        %1014 = vmatpush.msra.mxu0 %v571
        %1015 = vmatpush.msra.mxu0 %v563
        %1016 = vmatpush.msra.mxu0 %v555
        %1017 = vmatpush.msra.mxu0 %v547
        %1018 = vmatpush.msra.mxu0 %v539
        %1019 = vmatmul.f32.gmra.mxu0 %v797
        %v1020 = vpop.f32.mrf.mxu0
        %v1021 = vadd.f32 %v1001, %v1020
        %1022 = vdwg.mxu0
        %1023 = vmatpush.msra.mxu0 %v787
        %1024 = vmatpush.msra.mxu0 %v779
        %1025 = vmatpush.msra.mxu0 %v771
        %1026 = vmatpush.msra.mxu0 %v763
        %1027 = vmatpush.msra.mxu0 %v755
        %1028 = vmatpush.msra.mxu0 %v747
        %1029 = vmatpush.msra.mxu0 %v739
        %1030 = vmatpush.msra.mxu0 %v731
        %1031 = vmatpush.msra.mxu0 %v723
        %1032 = vmatpush.msra.mxu0 %v715
        %1033 = vmatpush.msra.mxu0 %v707
        %1034 = vmatpush.msra.mxu0 %v699
        %1035 = vmatpush.msra.mxu0 %v691
        %1036 = vmatpush.msra.mxu0 %v683
        %1037 = vmatpush.msra.mxu0 %v675
        %1038 = vmatpush.msra.mxu0 %v667
        %1039 = vmatmul.f32.gmra.mxu0 %v798
        %v1040 = vpop.f32.mrf.mxu0
        %v1041 = vadd.f32 %v1021, %v1040
        %1042 = vdwg.mxu0
        %1043 = vmatpush.msra.mxu0 %v404
        %1044 = vmatpush.msra.mxu0 %v396
        %1045 = vmatpush.msra.mxu0 %v388
        %1046 = vmatpush.msra.mxu0 %v380
        %1047 = vmatpush.msra.mxu0 %v372
        %1048 = vmatpush.msra.mxu0 %v364
        %1049 = vmatpush.msra.mxu0 %v356
        %1050 = vmatpush.msra.mxu0 %v348
        %1051 = vmatpush.msra.mxu0 %v340
        %1052 = vmatpush.msra.mxu0 %v332
        %1053 = vmatpush.msra.mxu0 %v324
        %1054 = vmatpush.msra.mxu0 %v316
        %1055 = vmatpush.msra.mxu0 %v308
        %1056 = vmatpush.msra.mxu0 %v300
        %1057 = vmatpush.msra.mxu0 %v292
        %1058 = vmatpush.msra.mxu0 %v284
        %1059 = vmatmul.f32.gmra.mxu0 %v795
        %v1060 = vpop.f32.mrf.mxu0
        %v1061 = vadd.f32 0.0, %v1060
        %1062 = vdwg.mxu0
        %1063 = vmatpush.msra.mxu0 %v532
        %1064 = vmatpush.msra.mxu0 %v524
        %1065 = vmatpush.msra.mxu0 %v516
        %1066 = vmatpush.msra.mxu0 %v508
        %1067 = vmatpush.msra.mxu0 %v500
        %1068 = vmatpush.msra.mxu0 %v492
        %1069 = vmatpush.msra.mxu0 %v484
        %1070 = vmatpush.msra.mxu0 %v476
        %1071 = vmatpush.msra.mxu0 %v468
        %1072 = vmatpush.msra.mxu0 %v460
        %1073 = vmatpush.msra.mxu0 %v452
        %1074 = vmatpush.msra.mxu0 %v444
        %1075 = vmatpush.msra.mxu0 %v436
        %1076 = vmatpush.msra.mxu0 %v428
        %1077 = vmatpush.msra.mxu0 %v420
        %1078 = vmatpush.msra.mxu0 %v412
        %1079 = vmatmul.f32.gmra.mxu0 %v796
        %v1080 = vpop.f32.mrf.mxu0
        %v1081 = vadd.f32 %v1061, %v1080
        %1082 = vdwg.mxu0
        %1083 = vmatpush.msra.mxu0 %v660
        %1084 = vmatpush.msra.mxu0 %v652
        %1085 = vmatpush.msra.mxu0 %v644
        %1086 = vmatpush.msra.mxu0 %v636
        %1087 = vmatpush.msra.mxu0 %v628
        %1088 = vmatpush.msra.mxu0 %v620
        %1089 = vmatpush.msra.mxu0 %v612
        %1090 = vmatpush.msra.mxu0 %v604
        %1091 = vmatpush.msra.mxu0 %v596
        %1092 = vmatpush.msra.mxu0 %v588
        %1093 = vmatpush.msra.mxu0 %v580
        %1094 = vmatpush.msra.mxu0 %v572
        %1095 = vmatpush.msra.mxu0 %v564
        %1096 = vmatpush.msra.mxu0 %v556
        %1097 = vmatpush.msra.mxu0 %v548
        %1098 = vmatpush.msra.mxu0 %v540
        %1099 = vmatmul.f32.gmra.mxu0 %v797
        %v1100 = vpop.f32.mrf.mxu0
        %v1101 = vadd.f32 %v1081, %v1100
        %1102 = vdwg.mxu0
        %1103 = vmatpush.msra.mxu0 %v788
        %1104 = vmatpush.msra.mxu0 %v780
        %1105 = vmatpush.msra.mxu0 %v772
        %1106 = vmatpush.msra.mxu0 %v764
        %1107 = vmatpush.msra.mxu0 %v756
        %1108 = vmatpush.msra.mxu0 %v748
        %1109 = vmatpush.msra.mxu0 %v740
        %1110 = vmatpush.msra.mxu0 %v732
        %1111 = vmatpush.msra.mxu0 %v724
        %1112 = vmatpush.msra.mxu0 %v716
        %1113 = vmatpush.msra.mxu0 %v708
        %1114 = vmatpush.msra.mxu0 %v700
        %1115 = vmatpush.msra.mxu0 %v692
        %1116 = vmatpush.msra.mxu0 %v684
        %1117 = vmatpush.msra.mxu0 %v676
        %1118 = vmatpush.msra.mxu0 %v668
        %1119 = vmatmul.f32.gmra.mxu0 %v798
        %v1120 = vpop.f32.mrf.mxu0
        %v1121 = vadd.f32 %v1101, %v1120
        %1122 = vdwg.mxu0
        %1123 = vmatpush.msra.mxu0 %v405
        %1124 = vmatpush.msra.mxu0 %v397
        %1125 = vmatpush.msra.mxu0 %v389
        %1126 = vmatpush.msra.mxu0 %v381
        %1127 = vmatpush.msra.mxu0 %v373
        %1128 = vmatpush.msra.mxu0 %v365
        %1129 = vmatpush.msra.mxu0 %v357
        %1130 = vmatpush.msra.mxu0 %v349
        %1131 = vmatpush.msra.mxu0 %v341
        %1132 = vmatpush.msra.mxu0 %v333
        %1133 = vmatpush.msra.mxu0 %v325
        %1134 = vmatpush.msra.mxu0 %v317
        %1135 = vmatpush.msra.mxu0 %v309
        %1136 = vmatpush.msra.mxu0 %v301
        %1137 = vmatpush.msra.mxu0 %v293
        %1138 = vmatpush.msra.mxu0 %v285
        %1139 = vmatmul.f32.gmra.mxu0 %v795
        %v1140 = vpop.f32.mrf.mxu0
        %v1141 = vadd.f32 0.0, %v1140
        %1142 = vdwg.mxu0
        %1143 = vmatpush.msra.mxu0 %v533
        %1144 = vmatpush.msra.mxu0 %v525
        %1145 = vmatpush.msra.mxu0 %v517
        %1146 = vmatpush.msra.mxu0 %v509
        %1147 = vmatpush.msra.mxu0 %v501
        %1148 = vmatpush.msra.mxu0 %v493
        %1149 = vmatpush.msra.mxu0 %v485
        %1150 = vmatpush.msra.mxu0 %v477
        %1151 = vmatpush.msra.mxu0 %v469
        %1152 = vmatpush.msra.mxu0 %v461
        %1153 = vmatpush.msra.mxu0 %v453
        %1154 = vmatpush.msra.mxu0 %v445
        %1155 = vmatpush.msra.mxu0 %v437
        %1156 = vmatpush.msra.mxu0 %v429
        %1157 = vmatpush.msra.mxu0 %v421
        %1158 = vmatpush.msra.mxu0 %v413
        %1159 = vmatmul.f32.gmra.mxu0 %v796
        %v1160 = vpop.f32.mrf.mxu0
        %v1161 = vadd.f32 %v1141, %v1160
        %1162 = vdwg.mxu0
        %1163 = vmatpush.msra.mxu0 %v661
        %1164 = vmatpush.msra.mxu0 %v653
        %1165 = vmatpush.msra.mxu0 %v645
        %1166 = vmatpush.msra.mxu0 %v637
        %1167 = vmatpush.msra.mxu0 %v629
        %1168 = vmatpush.msra.mxu0 %v621
        %1169 = vmatpush.msra.mxu0 %v613
        %1170 = vmatpush.msra.mxu0 %v605
        %1171 = vmatpush.msra.mxu0 %v597
        %1172 = vmatpush.msra.mxu0 %v589
        %1173 = vmatpush.msra.mxu0 %v581
        %1174 = vmatpush.msra.mxu0 %v573
        %1175 = vmatpush.msra.mxu0 %v565
        %1176 = vmatpush.msra.mxu0 %v557
        %1177 = vmatpush.msra.mxu0 %v549
        %1178 = vmatpush.msra.mxu0 %v541
        %1179 = vmatmul.f32.gmra.mxu0 %v797
        %v1180 = vpop.f32.mrf.mxu0
        %v1181 = vadd.f32 %v1161, %v1180
        %1182 = vdwg.mxu0
        %1183 = vmatpush.msra.mxu0 %v789
        %1184 = vmatpush.msra.mxu0 %v781
        %1185 = vmatpush.msra.mxu0 %v773
        %1186 = vmatpush.msra.mxu0 %v765
        %1187 = vmatpush.msra.mxu0 %v757
        %1188 = vmatpush.msra.mxu0 %v749
        %1189 = vmatpush.msra.mxu0 %v741
        %1190 = vmatpush.msra.mxu0 %v733
        %1191 = vmatpush.msra.mxu0 %v725
        %1192 = vmatpush.msra.mxu0 %v717
        %1193 = vmatpush.msra.mxu0 %v709
        %1194 = vmatpush.msra.mxu0 %v701
        %1195 = vmatpush.msra.mxu0 %v693
        %1196 = vmatpush.msra.mxu0 %v685
        %1197 = vmatpush.msra.mxu0 %v677
        %1198 = vmatpush.msra.mxu0 %v669
        %1199 = vmatmul.f32.gmra.mxu0 %v798
        %v1200 = vpop.f32.mrf.mxu0
        %v1201 = vadd.f32 %v1181, %v1200
        %1202 = vdwg.mxu0
        %1203 = vmatpush.msra.mxu0 %v406
        %1204 = vmatpush.msra.mxu0 %v398
        %1205 = vmatpush.msra.mxu0 %v390
        %1206 = vmatpush.msra.mxu0 %v382
        %1207 = vmatpush.msra.mxu0 %v374
        %1208 = vmatpush.msra.mxu0 %v366
        %1209 = vmatpush.msra.mxu0 %v358
        %1210 = vmatpush.msra.mxu0 %v350
        %1211 = vmatpush.msra.mxu0 %v342
        %1212 = vmatpush.msra.mxu0 %v334
        %1213 = vmatpush.msra.mxu0 %v326
        %1214 = vmatpush.msra.mxu0 %v318
        %1215 = vmatpush.msra.mxu0 %v310
        %1216 = vmatpush.msra.mxu0 %v302
        %1217 = vmatpush.msra.mxu0 %v294
        %1218 = vmatpush.msra.mxu0 %v286
        %1219 = vmatmul.f32.gmra.mxu0 %v795
        %v1220 = vpop.f32.mrf.mxu0
        %v1221 = vadd.f32 0.0, %v1220
        %1222 = vdwg.mxu0
        %1223 = vmatpush.msra.mxu0 %v534
        %1224 = vmatpush.msra.mxu0 %v526
        %1225 = vmatpush.msra.mxu0 %v518
        %1226 = vmatpush.msra.mxu0 %v510
        %1227 = vmatpush.msra.mxu0 %v502
        %1228 = vmatpush.msra.mxu0 %v494
        %1229 = vmatpush.msra.mxu0 %v486
        %1230 = vmatpush.msra.mxu0 %v478
        %1231 = vmatpush.msra.mxu0 %v470
        %1232 = vmatpush.msra.mxu0 %v462
        %1233 = vmatpush.msra.mxu0 %v454
        %1234 = vmatpush.msra.mxu0 %v446
        %1235 = vmatpush.msra.mxu0 %v438
        %1236 = vmatpush.msra.mxu0 %v430
        %1237 = vmatpush.msra.mxu0 %v422
        %1238 = vmatpush.msra.mxu0 %v414
        %1239 = vmatmul.f32.gmra.mxu0 %v796
        %v1240 = vpop.f32.mrf.mxu0
        %v1241 = vadd.f32 %v1221, %v1240
        %1242 = vdwg.mxu0
        %1243 = vmatpush.msra.mxu0 %v662
        %1244 = vmatpush.msra.mxu0 %v654
        %1245 = vmatpush.msra.mxu0 %v646
        %1246 = vmatpush.msra.mxu0 %v638
        %1247 = vmatpush.msra.mxu0 %v630
        %1248 = vmatpush.msra.mxu0 %v622
        %1249 = vmatpush.msra.mxu0 %v614
        %1250 = vmatpush.msra.mxu0 %v606
        %1251 = vmatpush.msra.mxu0 %v598
        %1252 = vmatpush.msra.mxu0 %v590
        %1253 = vmatpush.msra.mxu0 %v582
        %1254 = vmatpush.msra.mxu0 %v574
        %1255 = vmatpush.msra.mxu0 %v566
        %1256 = vmatpush.msra.mxu0 %v558
        %1257 = vmatpush.msra.mxu0 %v550
        %1258 = vmatpush.msra.mxu0 %v542
        %1259 = vmatmul.f32.gmra.mxu0 %v797
        %v1260 = vpop.f32.mrf.mxu0
        %v1261 = vadd.f32 %v1241, %v1260
        %1262 = vdwg.mxu0
        %1263 = vmatpush.msra.mxu0 %v790
        %1264 = vmatpush.msra.mxu0 %v782
        %1265 = vmatpush.msra.mxu0 %v774
        %1266 = vmatpush.msra.mxu0 %v766
        %1267 = vmatpush.msra.mxu0 %v758
        %1268 = vmatpush.msra.mxu0 %v750
        %1269 = vmatpush.msra.mxu0 %v742
        %1270 = vmatpush.msra.mxu0 %v734
        %1271 = vmatpush.msra.mxu0 %v726
        %1272 = vmatpush.msra.mxu0 %v718
        %1273 = vmatpush.msra.mxu0 %v710
        %1274 = vmatpush.msra.mxu0 %v702
        %1275 = vmatpush.msra.mxu0 %v694
        %1276 = vmatpush.msra.mxu0 %v686
        %1277 = vmatpush.msra.mxu0 %v678
        %1278 = vmatpush.msra.mxu0 %v670
        %1279 = vmatmul.f32.gmra.mxu0 %v798
        %v1280 = vpop.f32.mrf.mxu0
        %v1281 = vadd.f32 %v1261, %v1280
        %1282 = vdwg.mxu0
        %1283 = vmatpush.msra.mxu0 %v407
        %1284 = vmatpush.msra.mxu0 %v399
        %1285 = vmatpush.msra.mxu0 %v391
        %1286 = vmatpush.msra.mxu0 %v383
        %1287 = vmatpush.msra.mxu0 %v375
        %1288 = vmatpush.msra.mxu0 %v367
        %1289 = vmatpush.msra.mxu0 %v359
        %1290 = vmatpush.msra.mxu0 %v351
        %1291 = vmatpush.msra.mxu0 %v343
        %1292 = vmatpush.msra.mxu0 %v335
        %1293 = vmatpush.msra.mxu0 %v327
        %1294 = vmatpush.msra.mxu0 %v319
        %1295 = vmatpush.msra.mxu0 %v311
        %1296 = vmatpush.msra.mxu0 %v303
        %1297 = vmatpush.msra.mxu0 %v295
        %1298 = vmatpush.msra.mxu0 %v287
        %1299 = vmatmul.f32.gmra.mxu0 %v795
        %v1300 = vpop.f32.mrf.mxu0
        %v1301 = vadd.f32 0.0, %v1300
        %1302 = vdwg.mxu0
        %1303 = vmatpush.msra.mxu0 %v535
        %1304 = vmatpush.msra.mxu0 %v527
        %1305 = vmatpush.msra.mxu0 %v519
        %1306 = vmatpush.msra.mxu0 %v511
        %1307 = vmatpush.msra.mxu0 %v503
        %1308 = vmatpush.msra.mxu0 %v495
        %1309 = vmatpush.msra.mxu0 %v487
        %1310 = vmatpush.msra.mxu0 %v479
        %1311 = vmatpush.msra.mxu0 %v471
        %1312 = vmatpush.msra.mxu0 %v463
        %1313 = vmatpush.msra.mxu0 %v455
        %1314 = vmatpush.msra.mxu0 %v447
        %1315 = vmatpush.msra.mxu0 %v439
        %1316 = vmatpush.msra.mxu0 %v431
        %1317 = vmatpush.msra.mxu0 %v423
        %1318 = vmatpush.msra.mxu0 %v415
        %1319 = vmatmul.f32.gmra.mxu0 %v796
        %v1320 = vpop.f32.mrf.mxu0
        %v1321 = vadd.f32 %v1301, %v1320
        %1322 = vdwg.mxu0
        %1323 = vmatpush.msra.mxu0 %v663
        %1324 = vmatpush.msra.mxu0 %v655
        %1325 = vmatpush.msra.mxu0 %v647
        %1326 = vmatpush.msra.mxu0 %v639
        %1327 = vmatpush.msra.mxu0 %v631
        %1328 = vmatpush.msra.mxu0 %v623
        %1329 = vmatpush.msra.mxu0 %v615
        %1330 = vmatpush.msra.mxu0 %v607
        %1331 = vmatpush.msra.mxu0 %v599
        %1332 = vmatpush.msra.mxu0 %v591
        %1333 = vmatpush.msra.mxu0 %v583
        %1334 = vmatpush.msra.mxu0 %v575
        %1335 = vmatpush.msra.mxu0 %v567
        %1336 = vmatpush.msra.mxu0 %v559
        %1337 = vmatpush.msra.mxu0 %v551
        %1338 = vmatpush.msra.mxu0 %v543
        %1339 = vmatmul.f32.gmra.mxu0 %v797
        %v1340 = vpop.f32.mrf.mxu0
        %v1341 = vadd.f32 %v1321, %v1340
        %1342 = vdwg.mxu0
        %1343 = vmatpush.msra.mxu0 %v791
        %1344 = vmatpush.msra.mxu0 %v783
        %1345 = vmatpush.msra.mxu0 %v775
        %1346 = vmatpush.msra.mxu0 %v767
        %1347 = vmatpush.msra.mxu0 %v759
        %1348 = vmatpush.msra.mxu0 %v751
        %1349 = vmatpush.msra.mxu0 %v743
        %1350 = vmatpush.msra.mxu0 %v735
        %1351 = vmatpush.msra.mxu0 %v727
        %1352 = vmatpush.msra.mxu0 %v719
        %1353 = vmatpush.msra.mxu0 %v711
        %1354 = vmatpush.msra.mxu0 %v703
        %1355 = vmatpush.msra.mxu0 %v695
        %1356 = vmatpush.msra.mxu0 %v687
        %1357 = vmatpush.msra.mxu0 %v679
        %1358 = vmatpush.msra.mxu0 %v671
        %1359 = vmatmul.f32.gmra.mxu0 %v798
        %v1360 = vpop.f32.mrf.mxu0
        %v1361 = vadd.f32 %v1341, %v1360
        %1362 = vdwg.mxu0
        %1363 = vmatpush.msra.mxu0 %v408
        %1364 = vmatpush.msra.mxu0 %v400
        %1365 = vmatpush.msra.mxu0 %v392
        %1366 = vmatpush.msra.mxu0 %v384
        %1367 = vmatpush.msra.mxu0 %v376
        %1368 = vmatpush.msra.mxu0 %v368
        %1369 = vmatpush.msra.mxu0 %v360
        %1370 = vmatpush.msra.mxu0 %v352
        %1371 = vmatpush.msra.mxu0 %v344
        %1372 = vmatpush.msra.mxu0 %v336
        %1373 = vmatpush.msra.mxu0 %v328
        %1374 = vmatpush.msra.mxu0 %v320
        %1375 = vmatpush.msra.mxu0 %v312
        %1376 = vmatpush.msra.mxu0 %v304
        %1377 = vmatpush.msra.mxu0 %v296
        %1378 = vmatpush.msra.mxu0 %v288
        %1379 = vmatmul.f32.gmra.mxu0 %v795
        %v1380 = vpop.f32.mrf.mxu0
        %v1381 = vadd.f32 0.0, %v1380
        %1382 = vdwg.mxu0
        %1383 = vmatpush.msra.mxu0 %v536
        %1384 = vmatpush.msra.mxu0 %v528
        %1385 = vmatpush.msra.mxu0 %v520
        %1386 = vmatpush.msra.mxu0 %v512
        %1387 = vmatpush.msra.mxu0 %v504
        %1388 = vmatpush.msra.mxu0 %v496
        %1389 = vmatpush.msra.mxu0 %v488
        %1390 = vmatpush.msra.mxu0 %v480
        %1391 = vmatpush.msra.mxu0 %v472
        %1392 = vmatpush.msra.mxu0 %v464
        %1393 = vmatpush.msra.mxu0 %v456
        %1394 = vmatpush.msra.mxu0 %v448
        %1395 = vmatpush.msra.mxu0 %v440
        %1396 = vmatpush.msra.mxu0 %v432
        %1397 = vmatpush.msra.mxu0 %v424
        %1398 = vmatpush.msra.mxu0 %v416
        %1399 = vmatmul.f32.gmra.mxu0 %v796
        %v1400 = vpop.f32.mrf.mxu0
        %v1401 = vadd.f32 %v1381, %v1400
        %1402 = vdwg.mxu0
        %1403 = vmatpush.msra.mxu0 %v664
        %1404 = vmatpush.msra.mxu0 %v656
        %1405 = vmatpush.msra.mxu0 %v648
        %1406 = vmatpush.msra.mxu0 %v640
        %1407 = vmatpush.msra.mxu0 %v632
        %1408 = vmatpush.msra.mxu0 %v624
        %1409 = vmatpush.msra.mxu0 %v616
        %1410 = vmatpush.msra.mxu0 %v608
        %1411 = vmatpush.msra.mxu0 %v600
        %1412 = vmatpush.msra.mxu0 %v592
        %1413 = vmatpush.msra.mxu0 %v584
        %1414 = vmatpush.msra.mxu0 %v576
        %1415 = vmatpush.msra.mxu0 %v568
        %1416 = vmatpush.msra.mxu0 %v560
        %1417 = vmatpush.msra.mxu0 %v552
        %1418 = vmatpush.msra.mxu0 %v544
        %1419 = vmatmul.f32.gmra.mxu0 %v797
        %v1420 = vpop.f32.mrf.mxu0
        %v1421 = vadd.f32 %v1401, %v1420
        %1422 = vdwg.mxu0
        %1423 = vmatpush.msra.mxu0 %v792
        %1424 = vmatpush.msra.mxu0 %v784
        %1425 = vmatpush.msra.mxu0 %v776
        %1426 = vmatpush.msra.mxu0 %v768
        %1427 = vmatpush.msra.mxu0 %v760
        %1428 = vmatpush.msra.mxu0 %v752
        %1429 = vmatpush.msra.mxu0 %v744
        %1430 = vmatpush.msra.mxu0 %v736
        %1431 = vmatpush.msra.mxu0 %v728
        %1432 = vmatpush.msra.mxu0 %v720
        %1433 = vmatpush.msra.mxu0 %v712
        %1434 = vmatpush.msra.mxu0 %v704
        %1435 = vmatpush.msra.mxu0 %v696
        %1436 = vmatpush.msra.mxu0 %v688
        %1437 = vmatpush.msra.mxu0 %v680
        %1438 = vmatpush.msra.mxu0 %v672
        %1439 = vmatmul.f32.gmra.mxu0 %v798
        %v1440 = vpop.f32.mrf.mxu0
        %v1441 = vadd.f32 %v1421, %v1440
        %1442 = vdwg.mxu0
        %v1451 = vrot.slane %v961, 6
        %v1452 = vrot.slane %v1041, 4
        %v1453 = vrot.slane %v1121, 2
        %v1454 = vrot.slane %v1281, 6
        %v1455 = vrot.slane %v1361, 4
        %v1456 = vrot.slane %v1441, 2
        %vm1457 = vcmask 1041408
        %v1458 = vsel %vm1457, %v881, %v1451
        %vm1459 = vcmask 1045508
        %v1460 = vsel %vm1459, %v1452, %v1453
        %vm1461 = vcmask 1043456
        %v1462 = vsel %vm1461, %v1458, %v1460
        %v1463 = vsel %vm1457, %v1201, %v1454
        %v1464 = vsel %vm1459, %v1455, %v1456
        %v1465 = vsel %vm1461, %v1463, %v1464
        %v1468 = vadd.f32 %v278, %v1462
        %v1469 = vadd.f32 %v279, %v1465
        %1470 = vst [vmem:[#allocation2] sm:$0xff] %v1468
        %1471 = vst [vmem:[#allocation2 + $0x8] sm:$0xff] %v1469
        %p1472 = scmp.eq.s32.totalorder %s21, 5
        // Predicated region
        $region53: #{mobilenet162_forward.1} parent=39 // pred_check
          %p1473 = pneg %p1472
        $region54: #{mobilenet162_forward.1} parent=39 // pred_check_branch
          %1475 = sbr.rel (%p1473) target = $region56
        $region55: #{mobilenet162_forward.1} parent=39 // pred_region
          %v1476 = vld [vmem:[#allocation2] sm:$0xff]
          %v1477 = vld [vmem:[#allocation2 + $0x8] sm:$0xff]
          %v1478 = vld [vmem:[#allocation6] sm:$0xff]
          %v1480 = vperm.slane %v1478, 0
          %v1481 = vperm.slane %v1478, 1
          %v1482 = vperm.slane %v1478, 2
          %v1483 = vperm.slane %v1478, 3
          %v1484 = vperm.slane %v1478, 4
          %v1485 = vperm.slane %v1478, 5
          %v1486 = vperm.slane %v1478, 6
          %v1487 = vperm.slane %v1478, 7
          %v1488 = vrot.slane %v1481, 6
          %v1489 = vrot.slane %v1482, 4
          %v1490 = vrot.slane %v1483, 2
          %v1491 = vrot.slane %v1485, 6
          %v1492 = vrot.slane %v1486, 4
          %v1493 = vrot.slane %v1487, 2
          %v1494 = vsel %vm1457, %v1480, %v1488
          %v1495 = vsel %vm1459, %v1489, %v1490
          %v1496 = vsel %vm1461, %v1494, %v1495
          %v1497 = vsel %vm1457, %v1484, %v1491
          %v1498 = vsel %vm1459, %v1492, %v1493
          %v1499 = vsel %vm1461, %v1497, %v1498
          %v1502 = vadd.f32 %v1476, %v1496
          %v1503 = vadd.f32 %v1477, %v1499
          %v1504 = vld [vmem:[%s3] sm:$0xff]
          %v1505 = vld [vmem:[%s3 + $0x8] sm:$0xff]
          %v1506 = vld [vmem:[%s3 + $0x10] sm:$0xff]
          %v1507 = vld [vmem:[%s3 + $0x18] sm:$0xff]
          %v1508 = vld [vmem:[%s3 + $0x20] sm:$0xff]
          %v1509 = vld [vmem:[%s3 + $0x28] sm:$0xff]
          %v1510 = vld [vmem:[%s3 + $0x30] sm:$0xff]
          %v1511 = vld [vmem:[%s3 + $0x38] sm:$0xff]
          %v1512 = vld [vmem:[%s3 + $0x40] sm:$0xff]
          %v1513 = vld [vmem:[%s3 + $0x48] sm:$0xff]
          %v1514 = vld [vmem:[%s3 + $0x50] sm:$0xff]
          %v1515 = vld [vmem:[%s3 + $0x58] sm:$0xff]
          %v1516 = vld [vmem:[%s3 + $0x60] sm:$0xff]
          %v1517 = vld [vmem:[%s3 + $0x68] sm:$0xff]
          %v1518 = vld [vmem:[%s3 + $0x70] sm:$0xff]
          %v1519 = vld [vmem:[%s3 + $0x78] sm:$0xff]
          %v1520 = vld [vmem:[%s3 + $0x80] sm:$0xff]
          %v1521 = vld [vmem:[%s3 + $0x88] sm:$0xff]
          %v1522 = vld [vmem:[%s3 + $0x90] sm:$0xff]
          %v1523 = vld [vmem:[%s3 + $0x98] sm:$0xff]
          %v1524 = vld [vmem:[%s3 + $0xa0] sm:$0xff]
          %v1525 = vld [vmem:[%s3 + $0xa8] sm:$0xff]
          %v1526 = vld [vmem:[%s3 + $0xb0] sm:$0xff]
          %v1527 = vld [vmem:[%s3 + $0xb8] sm:$0xff]
          %v1528 = vld [vmem:[%s3 + $0xc0] sm:$0xff]
          %v1529 = vld [vmem:[%s3 + $0xc8] sm:$0xff]
          %v1530 = vld [vmem:[%s3 + $0xd0] sm:$0xff]
          %v1531 = vld [vmem:[%s3 + $0xd8] sm:$0xff]
          %v1532 = vld [vmem:[%s3 + $0xe0] sm:$0xff]
          %v1533 = vld [vmem:[%s3 + $0xe8] sm:$0xff]
          %v1534 = vld [vmem:[%s3 + $0xf0] sm:$0xff]
          %v1535 = vld [vmem:[%s3 + $0xf8] sm:$0xff]
          %v1536 = vld [vmem:[%s3 + $0x100] sm:$0xff]
          %v1537 = vld [vmem:[%s3 + $0x108] sm:$0xff]
          %v1538 = vld [vmem:[%s3 + $0x110] sm:$0xff]
          %v1539 = vld [vmem:[%s3 + $0x118] sm:$0xff]
          %v1540 = vld [vmem:[%s3 + $0x120] sm:$0xff]
          %v1541 = vld [vmem:[%s3 + $0x128] sm:$0xff]
          %v1542 = vld [vmem:[%s3 + $0x130] sm:$0xff]
          %v1543 = vld [vmem:[%s3 + $0x138] sm:$0xff]
          %v1544 = vld [vmem:[%s3 + $0x140] sm:$0xff]
          %v1545 = vld [vmem:[%s3 + $0x148] sm:$0xff]
          %v1546 = vld [vmem:[%s3 + $0x150] sm:$0xff]
          %v1547 = vld [vmem:[%s3 + $0x158] sm:$0xff]
          %v1548 = vld [vmem:[%s3 + $0x160] sm:$0xff]
          %v1549 = vld [vmem:[%s3 + $0x168] sm:$0xff]
          %v1550 = vld [vmem:[%s3 + $0x170] sm:$0xff]
          %v1551 = vld [vmem:[%s3 + $0x178] sm:$0xff]
          %v1552 = vld [vmem:[%s3 + $0x180] sm:$0xff]
          %v1553 = vld [vmem:[%s3 + $0x188] sm:$0xff]
          %v1554 = vld [vmem:[%s3 + $0x190] sm:$0xff]
          %v1555 = vld [vmem:[%s3 + $0x198] sm:$0xff]
          %v1556 = vld [vmem:[%s3 + $0x1a0] sm:$0xff]
          %v1557 = vld [vmem:[%s3 + $0x1a8] sm:$0xff]
          %v1558 = vld [vmem:[%s3 + $0x1b0] sm:$0xff]
          %v1559 = vld [vmem:[%s3 + $0x1b8] sm:$0xff]
          %v1560 = vld [vmem:[%s3 + $0x1c0] sm:$0xff]
          %v1561 = vld [vmem:[%s3 + $0x1c8] sm:$0xff]
          %v1562 = vld [vmem:[%s3 + $0x1d0] sm:$0xff]
          %v1563 = vld [vmem:[%s3 + $0x1d8] sm:$0xff]
          %v1564 = vld [vmem:[%s3 + $0x1e0] sm:$0xff]
          %v1565 = vld [vmem:[%s3 + $0x1e8] sm:$0xff]
          %v1566 = vld [vmem:[%s3 + $0x1f0] sm:$0xff]
          %v1567 = vld [vmem:[%s3 + $0x1f8] sm:$0xff]
          %v1568 = vld [vmem:[%s3 + $0x200] sm:$0xff]
          %v1569 = vld [vmem:[%s3 + $0x208] sm:$0xff]
          %v1570 = vld [vmem:[%s3 + $0x210] sm:$0xff]
          %v1571 = vld [vmem:[%s3 + $0x218] sm:$0xff]
          %v1572 = vld [vmem:[%s3 + $0x220] sm:$0xff]
          %v1573 = vld [vmem:[%s3 + $0x228] sm:$0xff]
          %v1574 = vld [vmem:[%s3 + $0x230] sm:$0xff]
          %v1575 = vld [vmem:[%s3 + $0x238] sm:$0xff]
          %v1576 = vld [vmem:[%s3 + $0x240] sm:$0xff]
          %v1577 = vld [vmem:[%s3 + $0x248] sm:$0xff]
          %v1578 = vld [vmem:[%s3 + $0x250] sm:$0xff]
          %v1579 = vld [vmem:[%s3 + $0x258] sm:$0xff]
          %v1580 = vld [vmem:[%s3 + $0x260] sm:$0xff]
          %v1581 = vld [vmem:[%s3 + $0x268] sm:$0xff]
          %v1582 = vld [vmem:[%s3 + $0x270] sm:$0xff]
          %v1583 = vld [vmem:[%s3 + $0x278] sm:$0xff]
          %v1584 = vld [vmem:[%s3 + $0x280] sm:$0xff]
          %v1585 = vld [vmem:[%s3 + $0x288] sm:$0xff]
          %v1586 = vld [vmem:[%s3 + $0x290] sm:$0xff]
          %v1587 = vld [vmem:[%s3 + $0x298] sm:$0xff]
          %v1588 = vld [vmem:[%s3 + $0x2a0] sm:$0xff]
          %v1589 = vld [vmem:[%s3 + $0x2a8] sm:$0xff]
          %v1590 = vld [vmem:[%s3 + $0x2b0] sm:$0xff]
          %v1591 = vld [vmem:[%s3 + $0x2b8] sm:$0xff]
          %v1592 = vld [vmem:[%s3 + $0x2c0] sm:$0xff]
          %v1593 = vld [vmem:[%s3 + $0x2c8] sm:$0xff]
          %v1594 = vld [vmem:[%s3 + $0x2d0] sm:$0xff]
          %v1595 = vld [vmem:[%s3 + $0x2d8] sm:$0xff]
          %v1596 = vld [vmem:[%s3 + $0x2e0] sm:$0xff]
          %v1597 = vld [vmem:[%s3 + $0x2e8] sm:$0xff]
          %v1598 = vld [vmem:[%s3 + $0x2f0] sm:$0xff]
          %v1599 = vld [vmem:[%s3 + $0x2f8] sm:$0xff]
          %v1600 = vld [vmem:[%s3 + $0x300] sm:$0xff]
          %v1601 = vld [vmem:[%s3 + $0x308] sm:$0xff]
          %v1602 = vld [vmem:[%s3 + $0x310] sm:$0xff]
          %v1603 = vld [vmem:[%s3 + $0x318] sm:$0xff]
          %v1604 = vld [vmem:[%s3 + $0x320] sm:$0xff]
          %v1605 = vld [vmem:[%s3 + $0x328] sm:$0xff]
          %v1606 = vld [vmem:[%s3 + $0x330] sm:$0xff]
          %v1607 = vld [vmem:[%s3 + $0x338] sm:$0xff]
          %v1608 = vld [vmem:[%s3 + $0x340] sm:$0xff]
          %v1609 = vld [vmem:[%s3 + $0x348] sm:$0xff]
          %v1610 = vld [vmem:[%s3 + $0x350] sm:$0xff]
          %v1611 = vld [vmem:[%s3 + $0x358] sm:$0xff]
          %v1612 = vld [vmem:[%s3 + $0x360] sm:$0xff]
          %v1613 = vld [vmem:[%s3 + $0x368] sm:$0xff]
          %v1614 = vld [vmem:[%s3 + $0x370] sm:$0xff]
          %v1615 = vld [vmem:[%s3 + $0x378] sm:$0xff]
          %v1616 = vld [vmem:[%s3 + $0x380] sm:$0xff]
          %v1617 = vld [vmem:[%s3 + $0x388] sm:$0xff]
          %v1618 = vld [vmem:[%s3 + $0x390] sm:$0xff]
          %v1619 = vld [vmem:[%s3 + $0x398] sm:$0xff]
          %v1620 = vld [vmem:[%s3 + $0x3a0] sm:$0xff]
          %v1621 = vld [vmem:[%s3 + $0x3a8] sm:$0xff]
          %v1622 = vld [vmem:[%s3 + $0x3b0] sm:$0xff]
          %v1623 = vld [vmem:[%s3 + $0x3b8] sm:$0xff]
          %v1624 = vld [vmem:[%s3 + $0x3c0] sm:$0xff]
          %v1625 = vld [vmem:[%s3 + $0x3c8] sm:$0xff]
          %v1626 = vld [vmem:[%s3 + $0x3d0] sm:$0xff]
          %v1627 = vld [vmem:[%s3 + $0x3d8] sm:$0xff]
          %v1628 = vld [vmem:[%s3 + $0x3e0] sm:$0xff]
          %v1629 = vld [vmem:[%s3 + $0x3e8] sm:$0xff]
          %v1630 = vld [vmem:[%s3 + $0x3f0] sm:$0xff]
          %v1631 = vld [vmem:[%s3 + $0x3f8] sm:$0xff]
          %v1632 = vld [vmem:[%s4] sm:$0x1]
          %v1634 = vperm.slane %v1632, 0
          %1638 = vst [vmem:[#allocation1] ss:$4 sm:$0xff] %v1502
          %s1639 = scalar_lea.vmem [#allocation1], 32
          %1640 = vst [vmem:[%s1639] ss:$4 sm:$0xff] %v1503
          %v1641 = vld.sshfl [vmem:[#allocation1] sm:$0xff pattern:$0x73625140]
          %v1642 = vld.sshfl [vmem:[#allocation1 + $0x8] sm:$0xff pattern:$0x73625140]
          %v1643 = vld.sshfl [vmem:[#allocation1 + $0x10] sm:$0xff pattern:$0x73625140]
          %v1644 = vld.sshfl [vmem:[#allocation1 + $0x18] sm:$0xff pattern:$0x73625140]
          %v1645 = vld.sshfl [vmem:[#allocation1 + $0x20] sm:$0xff pattern:$0x73625140]
          %v1646 = vld.sshfl [vmem:[#allocation1 + $0x28] sm:$0xff pattern:$0x73625140]
          %v1647 = vld.sshfl [vmem:[#allocation1 + $0x30] sm:$0xff pattern:$0x73625140]
          %v1648 = vld.sshfl [vmem:[#allocation1 + $0x38] sm:$0xff pattern:$0x73625140]
          %1657 = vmatpush.msra.mxu0 %v1519
          %1658 = vmatpush.msra.mxu0 %v1518
          %1659 = vmatpush.msra.mxu0 %v1517
          %1660 = vmatpush.msra.mxu0 %v1516
          %1661 = vmatpush.msra.mxu0 %v1515
          %1662 = vmatpush.msra.mxu0 %v1514
          %1663 = vmatpush.msra.mxu0 %v1513
          %1664 = vmatpush.msra.mxu0 %v1512
          %1665 = vmatpush.msra.mxu0 %v1511
          %1666 = vmatpush.msra.mxu0 %v1510
          %1667 = vmatpush.msra.mxu0 %v1509
          %1668 = vmatpush.msra.mxu0 %v1508
          %1669 = vmatpush.msra.mxu0 %v1507
          %1670 = vmatpush.msra.mxu0 %v1506
          %1671 = vmatpush.msra.mxu0 %v1505
          %1672 = vmatpush.msra.mxu0 %v1504
          %1673 = vmatmul.f32.gmra.mxu0 %v1641
          %v1674 = vpop.f32.mrf.mxu0
          %v1675 = vadd.f32 %v1634, %v1674
          %1676 = vdwg.mxu0
          %1677 = vmatpush.msra.mxu0 %v1535
          %1678 = vmatpush.msra.mxu0 %v1534
          %1679 = vmatpush.msra.mxu0 %v1533
          %1680 = vmatpush.msra.mxu0 %v1532
          %1681 = vmatpush.msra.mxu0 %v1531
          %1682 = vmatpush.msra.mxu0 %v1530
          %1683 = vmatpush.msra.mxu0 %v1529
          %1684 = vmatpush.msra.mxu0 %v1528
          %1685 = vmatpush.msra.mxu0 %v1527
          %1686 = vmatpush.msra.mxu0 %v1526
          %1687 = vmatpush.msra.mxu0 %v1525
          %1688 = vmatpush.msra.mxu0 %v1524
          %1689 = vmatpush.msra.mxu0 %v1523
          %1690 = vmatpush.msra.mxu0 %v1522
          %1691 = vmatpush.msra.mxu0 %v1521
          %1692 = vmatpush.msra.mxu0 %v1520
          %1693 = vmatmul.f32.gmra.mxu0 %v1642
          %v1694 = vpop.f32.mrf.mxu0
          %v1695 = vadd.f32 %v1675, %v1694
          %1696 = vdwg.mxu0
          %1697 = vmatpush.msra.mxu0 %v1551
          %1698 = vmatpush.msra.mxu0 %v1550
          %1699 = vmatpush.msra.mxu0 %v1549
          %1700 = vmatpush.msra.mxu0 %v1548
          %1701 = vmatpush.msra.mxu0 %v1547
          %1702 = vmatpush.msra.mxu0 %v1546
          %1703 = vmatpush.msra.mxu0 %v1545
          %1704 = vmatpush.msra.mxu0 %v1544
          %1705 = vmatpush.msra.mxu0 %v1543
          %1706 = vmatpush.msra.mxu0 %v1542
          %1707 = vmatpush.msra.mxu0 %v1541
          %1708 = vmatpush.msra.mxu0 %v1540
          %1709 = vmatpush.msra.mxu0 %v1539
          %1710 = vmatpush.msra.mxu0 %v1538
          %1711 = vmatpush.msra.mxu0 %v1537
          %1712 = vmatpush.msra.mxu0 %v1536
          %1713 = vmatmul.f32.gmra.mxu0 %v1643
          %v1714 = vpop.f32.mrf.mxu0
          %v1715 = vadd.f32 %v1695, %v1714
          %1716 = vdwg.mxu0
          %1717 = vmatpush.msra.mxu0 %v1567
          %1718 = vmatpush.msra.mxu0 %v1566
          %1719 = vmatpush.msra.mxu0 %v1565
          %1720 = vmatpush.msra.mxu0 %v1564
          %1721 = vmatpush.msra.mxu0 %v1563
          %1722 = vmatpush.msra.mxu0 %v1562
          %1723 = vmatpush.msra.mxu0 %v1561
          %1724 = vmatpush.msra.mxu0 %v1560
          %1725 = vmatpush.msra.mxu0 %v1559
          %1726 = vmatpush.msra.mxu0 %v1558
          %1727 = vmatpush.msra.mxu0 %v1557
          %1728 = vmatpush.msra.mxu0 %v1556
          %1729 = vmatpush.msra.mxu0 %v1555
          %1730 = vmatpush.msra.mxu0 %v1554
          %1731 = vmatpush.msra.mxu0 %v1553
          %1732 = vmatpush.msra.mxu0 %v1552
          %1733 = vmatmul.f32.gmra.mxu0 %v1644
          %v1734 = vpop.f32.mrf.mxu0
          %v1735 = vadd.f32 %v1715, %v1734
          %1736 = vdwg.mxu0
          %1737 = vmatpush.msra.mxu0 %v1583
          %1738 = vmatpush.msra.mxu0 %v1582
          %1739 = vmatpush.msra.mxu0 %v1581
          %1740 = vmatpush.msra.mxu0 %v1580
          %1741 = vmatpush.msra.mxu0 %v1579
          %1742 = vmatpush.msra.mxu0 %v1578
          %1743 = vmatpush.msra.mxu0 %v1577
          %1744 = vmatpush.msra.mxu0 %v1576
          %1745 = vmatpush.msra.mxu0 %v1575
          %1746 = vmatpush.msra.mxu0 %v1574
          %1747 = vmatpush.msra.mxu0 %v1573
          %1748 = vmatpush.msra.mxu0 %v1572
          %1749 = vmatpush.msra.mxu0 %v1571
          %1750 = vmatpush.msra.mxu0 %v1570
          %1751 = vmatpush.msra.mxu0 %v1569
          %1752 = vmatpush.msra.mxu0 %v1568
          %1753 = vmatmul.f32.gmra.mxu0 %v1645
          %v1754 = vpop.f32.mrf.mxu0
          %v1755 = vadd.f32 %v1735, %v1754
          %1756 = vdwg.mxu0
          %1757 = vmatpush.msra.mxu0 %v1599
          %1758 = vmatpush.msra.mxu0 %v1598
          %1759 = vmatpush.msra.mxu0 %v1597
          %1760 = vmatpush.msra.mxu0 %v1596
          %1761 = vmatpush.msra.mxu0 %v1595
          %1762 = vmatpush.msra.mxu0 %v1594
          %1763 = vmatpush.msra.mxu0 %v1593
          %1764 = vmatpush.msra.mxu0 %v1592
          %1765 = vmatpush.msra.mxu0 %v1591
          %1766 = vmatpush.msra.mxu0 %v1590
          %1767 = vmatpush.msra.mxu0 %v1589
          %1768 = vmatpush.msra.mxu0 %v1588
          %1769 = vmatpush.msra.mxu0 %v1587
          %1770 = vmatpush.msra.mxu0 %v1586
          %1771 = vmatpush.msra.mxu0 %v1585
          %1772 = vmatpush.msra.mxu0 %v1584
          %1773 = vmatmul.f32.gmra.mxu0 %v1646
          %v1774 = vpop.f32.mrf.mxu0
          %v1775 = vadd.f32 %v1755, %v1774
          %1776 = vdwg.mxu0
          %1777 = vmatpush.msra.mxu0 %v1615
          %1778 = vmatpush.msra.mxu0 %v1614
          %1779 = vmatpush.msra.mxu0 %v1613
          %1780 = vmatpush.msra.mxu0 %v1612
          %1781 = vmatpush.msra.mxu0 %v1611
          %1782 = vmatpush.msra.mxu0 %v1610
          %1783 = vmatpush.msra.mxu0 %v1609
          %1784 = vmatpush.msra.mxu0 %v1608
          %1785 = vmatpush.msra.mxu0 %v1607
          %1786 = vmatpush.msra.mxu0 %v1606
          %1787 = vmatpush.msra.mxu0 %v1605
          %1788 = vmatpush.msra.mxu0 %v1604
          %1789 = vmatpush.msra.mxu0 %v1603
          %1790 = vmatpush.msra.mxu0 %v1602
          %1791 = vmatpush.msra.mxu0 %v1601
          %1792 = vmatpush.msra.mxu0 %v1600
          %1793 = vmatmul.f32.gmra.mxu0 %v1647
          %v1794 = vpop.f32.mrf.mxu0
          %v1795 = vadd.f32 %v1775, %v1794
          %1796 = vdwg.mxu0
          %1797 = vmatpush.msra.mxu0 %v1631
          %1798 = vmatpush.msra.mxu0 %v1630
          %1799 = vmatpush.msra.mxu0 %v1629
          %1800 = vmatpush.msra.mxu0 %v1628
          %1801 = vmatpush.msra.mxu0 %v1627
          %1802 = vmatpush.msra.mxu0 %v1626
          %1803 = vmatpush.msra.mxu0 %v1625
          %1804 = vmatpush.msra.mxu0 %v1624
          %1805 = vmatpush.msra.mxu0 %v1623
          %1806 = vmatpush.msra.mxu0 %v1622
          %1807 = vmatpush.msra.mxu0 %v1621
          %1808 = vmatpush.msra.mxu0 %v1620
          %1809 = vmatpush.msra.mxu0 %v1619
          %1810 = vmatpush.msra.mxu0 %v1618
          %1811 = vmatpush.msra.mxu0 %v1617
          %1812 = vmatpush.msra.mxu0 %v1616
          %1813 = vmatmul.f32.gmra.mxu0 %v1648
          %v1814 = vpop.f32.mrf.mxu0
          %v1815 = vadd.f32 %v1795, %v1814
          %1816 = vdwg.mxu0
          %1817 = vst [vmem:[#allocation8] sm:$0x3] %v1815
        $region56: #{mobilenet162_forward.1} parent=39 // pred_fallthru
          _
        // Predicated region
        $region57: #{mobilenet162_forward.1} parent=39 // pred_check
          %p1818 = pneg %p149
        $region58: #{mobilenet162_forward.1} parent=39 // pred_check_branch
          %1820 = sbr.rel (%p1818) target = $region60
        $region59: #{mobilenet162_forward.1} parent=39 // pred_region
          %1822 = vsyncadd [#allocation5], 0
          %s1824 = sshll.u32 [#allocation8], 4
          %s1825 = int_to_ptr.vmem [resolvable:$true] %s1824
          %s1826 = sshll.u32 %s5, 4
          %s1827 = int_to_ptr.hbm [resolvable:$true] %s1826
          %1829 = dma.vmem_to_hbm [thread:$0]  %s1825, 32, %s1827, [#allocation5]
        $region60: #{mobilenet162_forward.1} parent=39 // pred_fallthru
          _
        // Predicated region
        $region61: #{mobilenet162_forward.1} parent=39 // pred_check
          %p1830 = pneg %p149
        $region62: #{mobilenet162_forward.1} parent=39 // pred_check_branch
          %1832 = sbr.rel (%p1830) target = $region64
        $region63: #{mobilenet162_forward.1} parent=39 // pred_region
          %1834 = dma.done [#allocation5], 32
        $region64: #{mobilenet162_forward.1} parent=39 // pred_fallthru
          _
      $region40: #{mobilenet162_forward.1} parent=5 // pred_fallthru
        _
      %p1835 = scmp.le.s32.totalorder 2, %s16
      // Predicated region
      $region65: #{mobilenet162_forward.1} parent=5 // pred_check
        %p1836 = pneg %p1835
      $region66: #{mobilenet162_forward.1} parent=5 // pred_check_branch
        %1838 = sbr.rel (%p1836) target = $region68
      $region67: #{mobilenet162_forward.1} parent=5 // pred_region
        %s1839 = ssub.s32 %s16, 2
      $region68: #{mobilenet162_forward.1} parent=5 // pred_fallthru
        _
    $region6: #{mobilenet162_forward.1} parent=1 // loop_footer
      %s20 = sadd.s32 1, %s16
    $region7: #{mobilenet162_forward.1} parent=1 // loop_footer_branch
      %15 = sbr.rel target = $region3
    $region8: #{mobilenet162_forward.1} parent=1 // loop_exit
      _
    %1840 = vsyncpa [#allocation4], 1
    %s1841 = scalar_lea.sflag [#allocation4], 1
    %1842 = vsyncpa %s1841, 1
    %1843 = vsyncpa [#allocation7], 1
    %1844 = vsyncpa [#allocation5], 1
    %s1845 = scalar_lea.sflag [#allocation5], 1
    %1846 = vsyncpa %s1845, 1

</llo_original>
